<compile_context>
chip_gen: v7x
topology: tpu7x:2x2x1
jax: 0.10.0
libtpu: 0.0.40
codegen_flags: <defaults>
</compile_context>

<pallas_src>
import functools

import jax
import jax.numpy as jnp
from jax.experimental import pallas as pl
from jax.experimental.pallas import tpu as pltpu


def _eca_block_kernel(x_ref, w1_ref, s1_ref, b1_ref, w2_ref, s2_ref, b2_ref,
                      eca_ref, mask_ref, o_ref, patch_ref, *, width):
    """One batch image per grid step.  Layout: (C, HW), HW on the lane axis."""
    C = x_ref.shape[1]
    HW = x_ref.shape[2]
    mxu_dtype = patch_ref.dtype

    def shifted_tap(v, s, m):
        # out[:, p] = v[:, p + s] where the tap stays inside the image, else 0.
        # The precomputed border mask m (1, HW) zeroes every row-wrap / off-image
        # position, including the cyclic wrap strip, so a plain lane shift with
        # zero fill is exact.
        if s == 0:
            return v
        if s > 0:
            sh = jnp.concatenate([v[:, s:], jnp.zeros((C, s), v.dtype)], axis=1)
        else:
            sh = jnp.concatenate([jnp.zeros((C, -s), v.dtype), v[:, :s]], axis=1)
        return sh * m

    def build_patch(v):
        # v: (C, HW) f32.  Writes the (9*C, HW) im2col patch into patch_ref with
        # full-width row stores.  Tap t = (dy+1)*3 + (dx+1); flat shift s = dy*W+dx.
        t = 0
        for dy in (-1, 0, 1):
            for dx in (-1, 0, 1):
                s = dy * width + dx
                m = mask_ref[t:t + 1, :]                      # (1, HW) border mask
                patch_ref[t * C:(t + 1) * C, :] = shifted_tap(v, s, m).astype(mxu_dtype)
                t += 1

    x = x_ref[0, :, :].astype(jnp.float32)                    # (C, HW)

    # ---- conv1 (single fused MXU matmul) + folded BN1 + ReLU ----
    build_patch(x)
    c1 = jnp.dot(w1_ref[...], patch_ref[...], preferred_element_type=jnp.float32)
    out1 = jnp.maximum(c1 * s1_ref[...] + b1_ref[...], 0.0)   # (C, HW)

    # ---- conv2 (single fused MXU matmul) + folded BN2 ----
    build_patch(out1)
    c2 = jnp.dot(w2_ref[...], patch_ref[...], preferred_element_type=jnp.float32)
    out2 = c2 * s2_ref[...] + b2_ref[...]                     # (C, HW)

    # ---- ECA: global avg pool + channel conv1d (k=3, pad=1, no bias) + sigmoid ----
    y = jnp.sum(out2, axis=1, keepdims=True) * (1.0 / HW)     # (C, 1)
    zpad = jnp.zeros((1, 1), jnp.float32)
    y_dn = jnp.concatenate([zpad, y[:-1, :]], axis=0)         # y[c-1]
    y_up = jnp.concatenate([y[1:, :], zpad], axis=0)          # y[c+1]
    z = eca_ref[0] * y_dn + eca_ref[1] * y + eca_ref[2] * y_up
    attn = jax.nn.sigmoid(z)                                  # (C, 1)

    # ---- channel scaling + residual add (re-read input tile) + ReLU ----
    res = x_ref[0, :, :].astype(jnp.float32)
    o_ref[0, :, :] = jnp.maximum(out2 * attn + res, 0.0).astype(o_ref.dtype)


def eca_basic_block(x_nchw, w1, bn1, w2, bn2, eca_w, eps=1e-5,
                    mxu_dtype=jnp.float32):
    """x_nchw: (N,C,H,W); w1/w2: HWIO (3,3,Cin,Cout); bn*: (gamma,beta,mean,var);
    eca_w: (3,) Conv1d(1,1,k=3,pad=1,bias=False) weight.  Eval-mode BN.
    mxu_dtype: set to jnp.bfloat16 on v6e/v7x for realistic channel counts
    (halves VMEM/DMA and doubles MXU throughput); f32 here so the 1e-4 check holds."""
    N, C, H, W = x_nchw.shape
    Cout = w1.shape[-1]
    assert w1.shape == (3, 3, C, Cout) and w2.shape == (3, 3, Cout, Cout)
    assert C == Cout, "identity residual requires inplanes == planes (downsample=None)"
    HW = H * W

    # Fold eval-mode BatchNorm into per-channel scale/shift, shaped (C, 1) so it
    # broadcasts over the lane (H*W) axis inside the kernel.
    g1, be1, m1, v1 = bn1
    sc1 = g1 / jnp.sqrt(v1 + eps)
    s1 = sc1.astype(jnp.float32).reshape(C, 1)
    b1 = (be1 - m1 * sc1).astype(jnp.float32).reshape(C, 1)
    g2, be2, m2, v2 = bn2
    sc2 = g2 / jnp.sqrt(v2 + eps)
    s2 = sc2.astype(jnp.float32).reshape(C, 1)
    b2 = (be2 - m2 * sc2).astype(jnp.float32).reshape(C, 1)

    # Conv weights HWIO (ky,kx,ci,co) -> (Cout, 9*Cin), column order
    # (ky*3 + kx)*Cin + ci, matching the in-kernel patch tap order.
    w1m = jnp.transpose(w1, (3, 0, 1, 2)).reshape(Cout, 9 * C).astype(mxu_dtype)
    w2m = jnp.transpose(w2, (3, 0, 1, 2)).reshape(Cout, 9 * Cout).astype(mxu_dtype)

    # Border masks for the 9 taps of a 3x3 / pad=1 conv, in flat (H*W) space.
    hh, ww = jnp.meshgrid(jnp.arange(H), jnp.arange(W), indexing="ij")
    masks = []
    for dy in (-1, 0, 1):
        for dx in (-1, 0, 1):
            m = ((hh + dy >= 0) & (hh + dy < H) & (ww + dx >= 0) & (ww + dx < W))
            masks.append(m.reshape(HW))
    masks = jnp.stack(masks, axis=0).astype(jnp.float32)       # (9, HW)

    x_flat = x_nchw.reshape(N, C, HW).astype(jnp.float32)      # lane-dense layout
    eca_w = eca_w.astype(jnp.float32)

    kernel = functools.partial(_eca_block_kernel, width=W)
    out_flat = pl.pallas_call(
        kernel,
        out_shape=jax.ShapeDtypeStruct((N, C, HW), jnp.float32),
        grid=(N,),
        in_specs=[
            pl.BlockSpec((1, C, HW), lambda n: (n, 0, 0)),      # x (per-image tile)
            pl.BlockSpec((C, 9 * C), lambda n: (0, 0)),         # w1 (Cout, 9*Cin)
            pl.BlockSpec((C, 1), lambda n: (0, 0)),             # bn1 scale
            pl.BlockSpec((C, 1), lambda n: (0, 0)),             # bn1 shift
            pl.BlockSpec((C, 9 * C), lambda n: (0, 0)),         # w2 (Cout, 9*Cout)
            pl.BlockSpec((C, 1), lambda n: (0, 0)),             # bn2 scale
            pl.BlockSpec((C, 1), lambda n: (0, 0)),             # bn2 shift
            pl.BlockSpec(memory_space=pltpu.MemorySpace.SMEM),  # eca weights (3,)
            pl.BlockSpec((9, HW), lambda n: (0, 0)),            # border masks
        ],
        out_specs=pl.BlockSpec((1, C, HW), lambda n: (n, 0, 0)),
        scratch_shapes=[
            pltpu.VMEM((9 * C, HW), mxu_dtype),   # im2col patch (reused by both convs)
        ],
        compiler_params=pltpu.CompilerParams(
            dimension_semantics=("parallel",)),
    )(x_flat, w1m, s1, b1, w2m, s2, b2, eca_w, masks)
    return out_flat.reshape(N, C, H, W)


def _reference(x_nchw, w1, bn1, w2, bn2, eca_w, eps=1e-5):
    """Pure-JAX NCHW reference mirroring the PyTorch forward (eval-mode BN)."""
    def bn(o, p):
        g, b, m, v = p
        return ((o - m[None, :, None, None]) / jnp.sqrt(v[None, :, None, None] + eps)
                * g[None, :, None, None] + b[None, :, None, None])

    def conv(o, w):
        return jax.lax.conv_general_dilated(
            o, w, (1, 1), 'SAME', dimension_numbers=('NCHW', 'HWIO', 'NCHW'))

    o = jnp.maximum(bn(conv(x_nchw, w1), bn1), 0.0)
    o = bn(conv(o, w2), bn2)
    y = jnp.mean(o, axis=(2, 3))                               # (N, C)
    ypad = jnp.pad(y, ((0, 0), (1, 1)))
    z = eca_w[0] * ypad[:, :-2] + eca_w[1] * ypad[:, 1:-1] + eca_w[2] * ypad[:, 2:]
    attn = jax.nn.sigmoid(z)
    o = o * attn[:, :, None, None]
    return jnp.maximum(o + x_nchw, 0.0)


if __name__ == "__main__":
    key = jax.random.PRNGKey(0)
    ks = jax.random.split(key, 12)

    # ECABasicBlock(inplanes=4, planes=4, stride=(1,1), downsample=None)
    N, C, H, W = 2, 4, 16, 16

    x = jax.random.normal(ks[0], (N, C, H, W), jnp.float32)    # PyTorch-style NCHW input

    # conv weights (PyTorch (out,in,3,3) -> created directly in HWIO)
    w1 = 0.2 * jax.random.normal(ks[1], (3, 3, C, C), jnp.float32)
    w2 = 0.2 * jax.random.normal(ks[2], (3, 3, C, C), jnp.float32)

    # BatchNorm params: (gamma, beta, running_mean, running_var)
    bn1 = (1.0 + 0.1 * jax.random.normal(ks[3], (C,), jnp.float32),
           0.1 * jax.random.normal(ks[4], (C,), jnp.float32),
           0.1 * jax.random.normal(ks[5], (C,), jnp.float32),
           1.0 + 0.1 * jnp.abs(jax.random.normal(ks[6], (C,), jnp.float32)))
    bn2 = (1.0 + 0.1 * jax.random.normal(ks[7], (C,), jnp.float32),
           0.1 * jax.random.normal(ks[8], (C,), jnp.float32),
           0.1 * jax.random.normal(ks[9], (C,), jnp.float32),
           1.0 + 0.1 * jnp.abs(jax.random.normal(ks[10], (C,), jnp.float32)))

    # ECA Conv1d(1, 1, kernel_size=3, padding=1, bias=False) weight, shape (3,)
    eca_w = 0.5 * jax.random.normal(ks[11], (3,), jnp.float32)

    out = eca_basic_block(x, w1, bn1, w2, bn2, eca_w)
    out = jax.block_until_ready(out)

    ref = _reference(x, w1, bn1, w2, bn2, eca_w)
    if not bool(jnp.allclose(out, ref, atol=1e-4, rtol=1e-4)):
        raise AssertionError("Pallas kernel output mismatch vs JAX reference")

    print("KERNEL_OK")
</pallas_src>

<mosaic_0001>
module attributes {stable_mosaic.version = 11 : i64} {
  func.func @_eca_block_kernel(%arg0: i32, %arg1: memref<1x4x256xf32, #tpu.memory_space<vmem>>, %arg2: memref<4x36xf32, #tpu.memory_space<vmem>>, %arg3: memref<4x1xf32, #tpu.memory_space<vmem>>, %arg4: memref<4x1xf32, #tpu.memory_space<vmem>>, %arg5: memref<4x36xf32, #tpu.memory_space<vmem>>, %arg6: memref<4x1xf32, #tpu.memory_space<vmem>>, %arg7: memref<4x1xf32, #tpu.memory_space<vmem>>, %arg8: memref<3xf32, #tpu.memory_space<smem>>, %arg9: memref<9x256xf32, #tpu.memory_space<vmem>>, %arg10: memref<1x4x256xf32, #tpu.memory_space<vmem>>, %arg11: memref<36x256xf32, #tpu.memory_space<vmem>>) attributes {dimension_semantics = [#tpu.dimension_semantics<parallel>], iteration_bounds = array<i64: 2>, scalar_prefetch = 0 : i64, scratch_operands = 1 : i64, tpu.core_type = #tpu.core_type<tc>, window_params = [{transform_indices = @transform_0, window_bounds = array<i64: 1, 4, 256>}, {pipeline_mode = #tpu.pipeline_mode<synchronous>, transform_indices = @transform_1, window_bounds = array<i64: 4, 36>}, {pipeline_mode = #tpu.pipeline_mode<synchronous>, transform_indices = @transform_2, window_bounds = array<i64: 4, 1>}, {pipeline_mode = #tpu.pipeline_mode<synchronous>, transform_indices = @transform_3, window_bounds = array<i64: 4, 1>}, {pipeline_mode = #tpu.pipeline_mode<synchronous>, transform_indices = @transform_4, window_bounds = array<i64: 4, 36>}, {pipeline_mode = #tpu.pipeline_mode<synchronous>, transform_indices = @transform_5, window_bounds = array<i64: 4, 1>}, {pipeline_mode = #tpu.pipeline_mode<synchronous>, transform_indices = @transform_6, window_bounds = array<i64: 4, 1>}, {transform_indices = @transform_7, window_bounds = array<i64: 3>}, {pipeline_mode = #tpu.pipeline_mode<synchronous>, transform_indices = @transform_8, window_bounds = array<i64: 9, 256>}, {transform_indices = @transform_9, window_bounds = array<i64: 1, 4, 256>}]} {
    %c0 = arith.constant 0 : index
    %c0_0 = arith.constant 0 : index
    %c0_1 = arith.constant 0 : index
    %0 = vector.load %arg1[%c0, %c0_0, %c0_1] : memref<1x4x256xf32, #tpu.memory_space<vmem>>, vector<1x4x256xf32>
    %1 = vector.shape_cast %0 : vector<1x4x256xf32> to vector<4x256xf32>
    %c0_2 = arith.constant 0 : index
    %c0_3 = arith.constant 0 : index
    %2 = vector.load %arg9[%c0_2, %c0_3] : memref<9x256xf32, #tpu.memory_space<vmem>>, vector<1x256xf32>
    %cst = arith.constant 0.000000e+00 : f32
    %3 = vector.broadcast %cst : f32 to vector<4x17xf32>
    %4 = vector.extract_strided_slice %1 {offsets = [0, 0], sizes = [4, 239], strides = [1, 1]} : vector<4x256xf32> to vector<4x239xf32>
    %5 = tpu.concatenate %3, %4 in 1 : vector<4x17xf32>, vector<4x239xf32> -> vector<4x256xf32>
    %6 = vector.broadcast %2 : vector<1x256xf32> to vector<4x256xf32>
    %7 = arith.mulf %5, %6 : vector<4x256xf32>
    %c0_4 = arith.constant 0 : index
    %c0_5 = arith.constant 0 : index
    %8 = vector.load %arg11[%c0_4, %c0_5] : memref<36x256xf32, #tpu.memory_space<vmem>>, vector<4x256xf32>
    tpu.vector_store %arg11[%c0_4, %c0_5], %7 {strides = array<i32>} : memref<36x256xf32, #tpu.memory_space<vmem>>, vector<4x256xf32>,
    %c1 = arith.constant 1 : index
    %c0_6 = arith.constant 0 : index
    %9 = vector.load %arg9[%c1, %c0_6] : memref<9x256xf32, #tpu.memory_space<vmem>>, vector<1x256xf32>
    %cst_7 = arith.constant 0.000000e+00 : f32
    %10 = vector.broadcast %cst_7 : f32 to vector<4x16xf32>
    %11 = vector.extract_strided_slice %1 {offsets = [0, 0], sizes = [4, 240], strides = [1, 1]} : vector<4x256xf32> to vector<4x240xf32>
    %12 = tpu.concatenate %10, %11 in 1 : vector<4x16xf32>, vector<4x240xf32> -> vector<4x256xf32>
    %13 = vector.broadcast %9 : vector<1x256xf32> to vector<4x256xf32>
    %14 = arith.mulf %12, %13 : vector<4x256xf32>
    %c4 = arith.constant 4 : index
    %c0_8 = arith.constant 0 : index
    %15 = vector.load %arg11[%c4, %c0_8] : memref<36x256xf32, #tpu.memory_space<vmem>>, vector<4x256xf32>
    tpu.vector_store %arg11[%c4, %c0_8], %14 {strides = array<i32>} : memref<36x256xf32, #tpu.memory_space<vmem>>, vector<4x256xf32>,
    %c2 = arith.constant 2 : index
    %c0_9 = arith.constant 0 : index
    %16 = vector.load %arg9[%c2, %c0_9] : memref<9x256xf32, #tpu.memory_space<vmem>>, vector<1x256xf32>
    %cst_10 = arith.constant 0.000000e+00 : f32
    %17 = vector.broadcast %cst_10 : f32 to vector<4x15xf32>
    %18 = vector.extract_strided_slice %1 {offsets = [0, 0], sizes = [4, 241], strides = [1, 1]} : vector<4x256xf32> to vector<4x241xf32>
    %19 = tpu.concatenate %17, %18 in 1 : vector<4x15xf32>, vector<4x241xf32> -> vector<4x256xf32>
    %20 = vector.broadcast %16 : vector<1x256xf32> to vector<4x256xf32>
    %21 = arith.mulf %19, %20 : vector<4x256xf32>
    %c8 = arith.constant 8 : index
    %c0_11 = arith.constant 0 : index
    %22 = vector.load %arg11[%c8, %c0_11] : memref<36x256xf32, #tpu.memory_space<vmem>>, vector<4x256xf32>
    tpu.vector_store %arg11[%c8, %c0_11], %21 {strides = array<i32>} : memref<36x256xf32, #tpu.memory_space<vmem>>, vector<4x256xf32>,
    %c3 = arith.constant 3 : index
    %c0_12 = arith.constant 0 : index
    %23 = vector.load %arg9[%c3, %c0_12] : memref<9x256xf32, #tpu.memory_space<vmem>>, vector<1x256xf32>
    %cst_13 = arith.constant 0.000000e+00 : f32
    %24 = vector.broadcast %cst_13 : f32 to vector<4x1xf32>
    %25 = vector.extract_strided_slice %1 {offsets = [0, 0], sizes = [4, 255], strides = [1, 1]} : vector<4x256xf32> to vector<4x255xf32>
    %26 = tpu.concatenate %24, %25 in 1 : vector<4x1xf32>, vector<4x255xf32> -> vector<4x256xf32>
    %27 = vector.broadcast %23 : vector<1x256xf32> to vector<4x256xf32>
    %28 = arith.mulf %26, %27 : vector<4x256xf32>
    %c12 = arith.constant 12 : index
    %c0_14 = arith.constant 0 : index
    %29 = vector.load %arg11[%c12, %c0_14] : memref<36x256xf32, #tpu.memory_space<vmem>>, vector<4x256xf32>
    tpu.vector_store %arg11[%c12, %c0_14], %28 {strides = array<i32>} : memref<36x256xf32, #tpu.memory_space<vmem>>, vector<4x256xf32>,
    %c16 = arith.constant 16 : index
    %c0_15 = arith.constant 0 : index
    %30 = vector.load %arg11[%c16, %c0_15] : memref<36x256xf32, #tpu.memory_space<vmem>>, vector<4x256xf32>
    tpu.vector_store %arg11[%c16, %c0_15], %1 {strides = array<i32>} : memref<36x256xf32, #tpu.memory_space<vmem>>, vector<4x256xf32>,
    %c5 = arith.constant 5 : index
    %c0_16 = arith.constant 0 : index
    %31 = vector.load %arg9[%c5, %c0_16] : memref<9x256xf32, #tpu.memory_space<vmem>>, vector<1x256xf32>
    %32 = vector.extract_strided_slice %1 {offsets = [0, 1], sizes = [4, 255], strides = [1, 1]} : vector<4x256xf32> to vector<4x255xf32>
    %cst_17 = arith.constant 0.000000e+00 : f32
    %33 = vector.broadcast %cst_17 : f32 to vector<4x1xf32>
    %34 = tpu.concatenate %32, %33 in 1 : vector<4x255xf32>, vector<4x1xf32> -> vector<4x256xf32>
    %35 = vector.broadcast %31 : vector<1x256xf32> to vector<4x256xf32>
    %36 = arith.mulf %34, %35 : vector<4x256xf32>
    %c20 = arith.constant 20 : index
    %c0_18 = arith.constant 0 : index
    %37 = vector.load %arg11[%c20, %c0_18] : memref<36x256xf32, #tpu.memory_space<vmem>>, vector<4x256xf32>
    tpu.vector_store %arg11[%c20, %c0_18], %36 {strides = array<i32>} : memref<36x256xf32, #tpu.memory_space<vmem>>, vector<4x256xf32>,
    %c6 = arith.constant 6 : index
    %c0_19 = arith.constant 0 : index
    %38 = vector.load %arg9[%c6, %c0_19] : memref<9x256xf32, #tpu.memory_space<vmem>>, vector<1x256xf32>
    %39 = vector.extract_strided_slice %1 {offsets = [0, 15], sizes = [4, 241], strides = [1, 1]} : vector<4x256xf32> to vector<4x241xf32>
    %cst_20 = arith.constant 0.000000e+00 : f32
    %40 = vector.broadcast %cst_20 : f32 to vector<4x15xf32>
    %41 = tpu.concatenate %39, %40 in 1 : vector<4x241xf32>, vector<4x15xf32> -> vector<4x256xf32>
    %42 = vector.broadcast %38 : vector<1x256xf32> to vector<4x256xf32>
    %43 = arith.mulf %41, %42 : vector<4x256xf32>
    %c24 = arith.constant 24 : index
    %c0_21 = arith.constant 0 : index
    %44 = vector.load %arg11[%c24, %c0_21] : memref<36x256xf32, #tpu.memory_space<vmem>>, vector<4x256xf32>
    tpu.vector_store %arg11[%c24, %c0_21], %43 {strides = array<i32>} : memref<36x256xf32, #tpu.memory_space<vmem>>, vector<4x256xf32>,
    %c7 = arith.constant 7 : index
    %c0_22 = arith.constant 0 : index
    %45 = vector.load %arg9[%c7, %c0_22] : memref<9x256xf32, #tpu.memory_space<vmem>>, vector<1x256xf32>
    %46 = vector.extract_strided_slice %1 {offsets = [0, 16], sizes = [4, 240], strides = [1, 1]} : vector<4x256xf32> to vector<4x240xf32>
    %cst_23 = arith.constant 0.000000e+00 : f32
    %47 = vector.broadcast %cst_23 : f32 to vector<4x16xf32>
    %48 = tpu.concatenate %46, %47 in 1 : vector<4x240xf32>, vector<4x16xf32> -> vector<4x256xf32>
    %49 = vector.broadcast %45 : vector<1x256xf32> to vector<4x256xf32>
    %50 = arith.mulf %48, %49 : vector<4x256xf32>
    %c28 = arith.constant 28 : index
    %c0_24 = arith.constant 0 : index
    %51 = vector.load %arg11[%c28, %c0_24] : memref<36x256xf32, #tpu.memory_space<vmem>>, vector<4x256xf32>
    tpu.vector_store %arg11[%c28, %c0_24], %50 {strides = array<i32>} : memref<36x256xf32, #tpu.memory_space<vmem>>, vector<4x256xf32>,
    %c8_25 = arith.constant 8 : index
    %c0_26 = arith.constant 0 : index
    %52 = vector.load %arg9[%c8_25, %c0_26] : memref<9x256xf32, #tpu.memory_space<vmem>>, vector<1x256xf32>
    %53 = vector.extract_strided_slice %1 {offsets = [0, 17], sizes = [4, 239], strides = [1, 1]} : vector<4x256xf32> to vector<4x239xf32>
    %cst_27 = arith.constant 0.000000e+00 : f32
    %54 = vector.broadcast %cst_27 : f32 to vector<4x17xf32>
    %55 = tpu.concatenate %53, %54 in 1 : vector<4x239xf32>, vector<4x17xf32> -> vector<4x256xf32>
    %56 = vector.broadcast %52 : vector<1x256xf32> to vector<4x256xf32>
    %57 = arith.mulf %55, %56 : vector<4x256xf32>
    %c32 = arith.constant 32 : index
    %c0_28 = arith.constant 0 : index
    %58 = vector.load %arg11[%c32, %c0_28] : memref<36x256xf32, #tpu.memory_space<vmem>>, vector<4x256xf32>
    tpu.vector_store %arg11[%c32, %c0_28], %57 {strides = array<i32>} : memref<36x256xf32, #tpu.memory_space<vmem>>, vector<4x256xf32>,
    %c0_29 = arith.constant 0 : index
    %c0_30 = arith.constant 0 : index
    %59 = vector.load %arg2[%c0_29, %c0_30] : memref<4x36xf32, #tpu.memory_space<vmem>>, vector<4x36xf32>
    %c0_31 = arith.constant 0 : index
    %c0_32 = arith.constant 0 : index
    %60 = vector.load %arg11[%c0_31, %c0_32] : memref<36x256xf32, #tpu.memory_space<vmem>>, vector<36x256xf32>
    %cst_33 = arith.constant dense<0.000000e+00> : vector<4x256xf32>
    %61 = tpu.matmul %59, %60, %cst_33 {dimension_numbers = #tpu.dot_dimension_numbers<[1], [0], [0], [1], [0, 0, 1, 1], [], []>} : vector<4x36xf32>, vector<36x256xf32>, vector<4x256xf32> -> vector<4x256xf32>
    %c0_34 = arith.constant 0 : index
    %c0_35 = arith.constant 0 : index
    %62 = vector.load %arg3[%c0_34, %c0_35] : memref<4x1xf32, #tpu.memory_space<vmem>>, vector<4x1xf32>
    %63 = vector.broadcast %62 : vector<4x1xf32> to vector<4x256xf32>
    %64 = arith.mulf %61, %63 : vector<4x256xf32>
    %c0_36 = arith.constant 0 : index
    %c0_37 = arith.constant 0 : index
    %65 = vector.load %arg4[%c0_36, %c0_37] : memref<4x1xf32, #tpu.memory_space<vmem>>, vector<4x1xf32>
    %66 = vector.broadcast %65 : vector<4x1xf32> to vector<4x256xf32>
    %67 = arith.addf %64, %66 : vector<4x256xf32>
    %cst_38 = arith.constant 0.000000e+00 : f32
    %68 = vector.broadcast %cst_38 : f32 to vector<4x256xf32>
    %69 = arith.maximumf %67, %68 : vector<4x256xf32>
    %c0_39 = arith.constant 0 : index
    %c0_40 = arith.constant 0 : index
    %70 = vector.load %arg9[%c0_39, %c0_40] : memref<9x256xf32, #tpu.memory_space<vmem>>, vector<1x256xf32>
    %cst_41 = arith.constant 0.000000e+00 : f32
    %71 = vector.broadcast %cst_41 : f32 to vector<4x17xf32>
    %72 = vector.extract_strided_slice %69 {offsets = [0, 0], sizes = [4, 239], strides = [1, 1]} : vector<4x256xf32> to vector<4x239xf32>
    %73 = tpu.concatenate %71, %72 in 1 : vector<4x17xf32>, vector<4x239xf32> -> vector<4x256xf32>
    %74 = vector.broadcast %70 : vector<1x256xf32> to vector<4x256xf32>
    %75 = arith.mulf %73, %74 : vector<4x256xf32>
    %c0_42 = arith.constant 0 : index
    %c0_43 = arith.constant 0 : index
    %76 = vector.load %arg11[%c0_42, %c0_43] : memref<36x256xf32, #tpu.memory_space<vmem>>, vector<4x256xf32>
    tpu.vector_store %arg11[%c0_42, %c0_43], %75 {strides = array<i32>} : memref<36x256xf32, #tpu.memory_space<vmem>>, vector<4x256xf32>,
    %c1_44 = arith.constant 1 : index
    %c0_45 = arith.constant 0 : index
    %77 = vector.load %arg9[%c1_44, %c0_45] : memref<9x256xf32, #tpu.memory_space<vmem>>, vector<1x256xf32>
    %cst_46 = arith.constant 0.000000e+00 : f32
    %78 = vector.broadcast %cst_46 : f32 to vector<4x16xf32>
    %79 = vector.extract_strided_slice %69 {offsets = [0, 0], sizes = [4, 240], strides = [1, 1]} : vector<4x256xf32> to vector<4x240xf32>
    %80 = tpu.concatenate %78, %79 in 1 : vector<4x16xf32>, vector<4x240xf32> -> vector<4x256xf32>
    %81 = vector.broadcast %77 : vector<1x256xf32> to vector<4x256xf32>
    %82 = arith.mulf %80, %81 : vector<4x256xf32>
    %c4_47 = arith.constant 4 : index
    %c0_48 = arith.constant 0 : index
    %83 = vector.load %arg11[%c4_47, %c0_48] : memref<36x256xf32, #tpu.memory_space<vmem>>, vector<4x256xf32>
    tpu.vector_store %arg11[%c4_47, %c0_48], %82 {strides = array<i32>} : memref<36x256xf32, #tpu.memory_space<vmem>>, vector<4x256xf32>,
    %c2_49 = arith.constant 2 : index
    %c0_50 = arith.constant 0 : index
    %84 = vector.load %arg9[%c2_49, %c0_50] : memref<9x256xf32, #tpu.memory_space<vmem>>, vector<1x256xf32>
    %cst_51 = arith.constant 0.000000e+00 : f32
    %85 = vector.broadcast %cst_51 : f32 to vector<4x15xf32>
    %86 = vector.extract_strided_slice %69 {offsets = [0, 0], sizes = [4, 241], strides = [1, 1]} : vector<4x256xf32> to vector<4x241xf32>
    %87 = tpu.concatenate %85, %86 in 1 : vector<4x15xf32>, vector<4x241xf32> -> vector<4x256xf32>
    %88 = vector.broadcast %84 : vector<1x256xf32> to vector<4x256xf32>
    %89 = arith.mulf %87, %88 : vector<4x256xf32>
    %c8_52 = arith.constant 8 : index
    %c0_53 = arith.constant 0 : index
    %90 = vector.load %arg11[%c8_52, %c0_53] : memref<36x256xf32, #tpu.memory_space<vmem>>, vector<4x256xf32>
    tpu.vector_store %arg11[%c8_52, %c0_53], %89 {strides = array<i32>} : memref<36x256xf32, #tpu.memory_space<vmem>>, vector<4x256xf32>,
    %c3_54 = arith.constant 3 : index
    %c0_55 = arith.constant 0 : index
    %91 = vector.load %arg9[%c3_54, %c0_55] : memref<9x256xf32, #tpu.memory_space<vmem>>, vector<1x256xf32>
    %cst_56 = arith.constant 0.000000e+00 : f32
    %92 = vector.broadcast %cst_56 : f32 to vector<4x1xf32>
    %93 = vector.extract_strided_slice %69 {offsets = [0, 0], sizes = [4, 255], strides = [1, 1]} : vector<4x256xf32> to vector<4x255xf32>
    %94 = tpu.concatenate %92, %93 in 1 : vector<4x1xf32>, vector<4x255xf32> -> vector<4x256xf32>
    %95 = vector.broadcast %91 : vector<1x256xf32> to vector<4x256xf32>
    %96 = arith.mulf %94, %95 : vector<4x256xf32>
    %c12_57 = arith.constant 12 : index
    %c0_58 = arith.constant 0 : index
    %97 = vector.load %arg11[%c12_57, %c0_58] : memref<36x256xf32, #tpu.memory_space<vmem>>, vector<4x256xf32>
    tpu.vector_store %arg11[%c12_57, %c0_58], %96 {strides = array<i32>} : memref<36x256xf32, #tpu.memory_space<vmem>>, vector<4x256xf32>,
    %c16_59 = arith.constant 16 : index
    %c0_60 = arith.constant 0 : index
    %98 = vector.load %arg11[%c16_59, %c0_60] : memref<36x256xf32, #tpu.memory_space<vmem>>, vector<4x256xf32>
    tpu.vector_store %arg11[%c16_59, %c0_60], %69 {strides = array<i32>} : memref<36x256xf32, #tpu.memory_space<vmem>>, vector<4x256xf32>,
    %c5_61 = arith.constant 5 : index
    %c0_62 = arith.constant 0 : index
    %99 = vector.load %arg9[%c5_61, %c0_62] : memref<9x256xf32, #tpu.memory_space<vmem>>, vector<1x256xf32>
    %100 = vector.extract_strided_slice %69 {offsets = [0, 1], sizes = [4, 255], strides = [1, 1]} : vector<4x256xf32> to vector<4x255xf32>
    %cst_63 = arith.constant 0.000000e+00 : f32
    %101 = vector.broadcast %cst_63 : f32 to vector<4x1xf32>
    %102 = tpu.concatenate %100, %101 in 1 : vector<4x255xf32>, vector<4x1xf32> -> vector<4x256xf32>
    %103 = vector.broadcast %99 : vector<1x256xf32> to vector<4x256xf32>
    %104 = arith.mulf %102, %103 : vector<4x256xf32>
    %c20_64 = arith.constant 20 : index
    %c0_65 = arith.constant 0 : index
    %105 = vector.load %arg11[%c20_64, %c0_65] : memref<36x256xf32, #tpu.memory_space<vmem>>, vector<4x256xf32>
    tpu.vector_store %arg11[%c20_64, %c0_65], %104 {strides = array<i32>} : memref<36x256xf32, #tpu.memory_space<vmem>>, vector<4x256xf32>,
    %c6_66 = arith.constant 6 : index
    %c0_67 = arith.constant 0 : index
    %106 = vector.load %arg9[%c6_66, %c0_67] : memref<9x256xf32, #tpu.memory_space<vmem>>, vector<1x256xf32>
    %107 = vector.extract_strided_slice %69 {offsets = [0, 15], sizes = [4, 241], strides = [1, 1]} : vector<4x256xf32> to vector<4x241xf32>
    %cst_68 = arith.constant 0.000000e+00 : f32
    %108 = vector.broadcast %cst_68 : f32 to vector<4x15xf32>
    %109 = tpu.concatenate %107, %108 in 1 : vector<4x241xf32>, vector<4x15xf32> -> vector<4x256xf32>
    %110 = vector.broadcast %106 : vector<1x256xf32> to vector<4x256xf32>
    %111 = arith.mulf %109, %110 : vector<4x256xf32>
    %c24_69 = arith.constant 24 : index
    %c0_70 = arith.constant 0 : index
    %112 = vector.load %arg11[%c24_69, %c0_70] : memref<36x256xf32, #tpu.memory_space<vmem>>, vector<4x256xf32>
    tpu.vector_store %arg11[%c24_69, %c0_70], %111 {strides = array<i32>} : memref<36x256xf32, #tpu.memory_space<vmem>>, vector<4x256xf32>,
    %c7_71 = arith.constant 7 : index
    %c0_72 = arith.constant 0 : index
    %113 = vector.load %arg9[%c7_71, %c0_72] : memref<9x256xf32, #tpu.memory_space<vmem>>, vector<1x256xf32>
    %114 = vector.extract_strided_slice %69 {offsets = [0, 16], sizes = [4, 240], strides = [1, 1]} : vector<4x256xf32> to vector<4x240xf32>
    %cst_73 = arith.constant 0.000000e+00 : f32
    %115 = vector.broadcast %cst_73 : f32 to vector<4x16xf32>
    %116 = tpu.concatenate %114, %115 in 1 : vector<4x240xf32>, vector<4x16xf32> -> vector<4x256xf32>
    %117 = vector.broadcast %113 : vector<1x256xf32> to vector<4x256xf32>
    %118 = arith.mulf %116, %117 : vector<4x256xf32>
    %c28_74 = arith.constant 28 : index
    %c0_75 = arith.constant 0 : index
    %119 = vector.load %arg11[%c28_74, %c0_75] : memref<36x256xf32, #tpu.memory_space<vmem>>, vector<4x256xf32>
    tpu.vector_store %arg11[%c28_74, %c0_75], %118 {strides = array<i32>} : memref<36x256xf32, #tpu.memory_space<vmem>>, vector<4x256xf32>,
    %c8_76 = arith.constant 8 : index
    %c0_77 = arith.constant 0 : index
    %120 = vector.load %arg9[%c8_76, %c0_77] : memref<9x256xf32, #tpu.memory_space<vmem>>, vector<1x256xf32>
    %121 = vector.extract_strided_slice %69 {offsets = [0, 17], sizes = [4, 239], strides = [1, 1]} : vector<4x256xf32> to vector<4x239xf32>
    %cst_78 = arith.constant 0.000000e+00 : f32
    %122 = vector.broadcast %cst_78 : f32 to vector<4x17xf32>
    %123 = tpu.concatenate %121, %122 in 1 : vector<4x239xf32>, vector<4x17xf32> -> vector<4x256xf32>
    %124 = vector.broadcast %120 : vector<1x256xf32> to vector<4x256xf32>
    %125 = arith.mulf %123, %124 : vector<4x256xf32>
    %c32_79 = arith.constant 32 : index
    %c0_80 = arith.constant 0 : index
    %126 = vector.load %arg11[%c32_79, %c0_80] : memref<36x256xf32, #tpu.memory_space<vmem>>, vector<4x256xf32>
    tpu.vector_store %arg11[%c32_79, %c0_80], %125 {strides = array<i32>} : memref<36x256xf32, #tpu.memory_space<vmem>>, vector<4x256xf32>,
    %c0_81 = arith.constant 0 : index
    %c0_82 = arith.constant 0 : index
    %127 = vector.load %arg5[%c0_81, %c0_82] : memref<4x36xf32, #tpu.memory_space<vmem>>, vector<4x36xf32>
    %c0_83 = arith.constant 0 : index
    %c0_84 = arith.constant 0 : index
    %128 = vector.load %arg11[%c0_83, %c0_84] : memref<36x256xf32, #tpu.memory_space<vmem>>, vector<36x256xf32>
    %cst_85 = arith.constant dense<0.000000e+00> : vector<4x256xf32>
    %129 = tpu.matmul %127, %128, %cst_85 {dimension_numbers = #tpu.dot_dimension_numbers<[1], [0], [0], [1], [0, 0, 1, 1], [], []>} : vector<4x36xf32>, vector<36x256xf32>, vector<4x256xf32> -> vector<4x256xf32>
    %c0_86 = arith.constant 0 : index
    %c0_87 = arith.constant 0 : index
    %130 = vector.load %arg6[%c0_86, %c0_87] : memref<4x1xf32, #tpu.memory_space<vmem>>, vector<4x1xf32>
    %131 = vector.broadcast %130 : vector<4x1xf32> to vector<4x256xf32>
    %132 = arith.mulf %129, %131 : vector<4x256xf32>
    %c0_88 = arith.constant 0 : index
    %c0_89 = arith.constant 0 : index
    %133 = vector.load %arg7[%c0_88, %c0_89] : memref<4x1xf32, #tpu.memory_space<vmem>>, vector<4x1xf32>
    %134 = vector.broadcast %133 : vector<4x1xf32> to vector<4x256xf32>
    %135 = arith.addf %132, %134 : vector<4x256xf32>
    %cst_90 = arith.constant dense<0.000000e+00> : vector<4xf32>
    %136 = vector.multi_reduction <add>, %135, %cst_90 [1] : vector<4x256xf32> to vector<4xf32>
    %137 = vector.shape_cast %136 : vector<4xf32> to vector<4x1xf32>
    %cst_91 = arith.constant 3.906250e-03 : f32
    %138 = vector.broadcast %cst_91 : f32 to vector<4x1xf32>
    %139 = arith.mulf %137, %138 : vector<4x1xf32>
    %cst_92 = arith.constant 0.000000e+00 : f32
    %140 = vector.broadcast %cst_92 : f32 to vector<1x1xf32>
    %141 = vector.extract_strided_slice %139 {offsets = [0, 0], sizes = [3, 1], strides = [1, 1]} : vector<4x1xf32> to vector<3x1xf32>
    %142 = tpu.concatenate %140, %141 in 0 : vector<1x1xf32>, vector<3x1xf32> -> vector<4x1xf32>
    %143 = vector.extract_strided_slice %139 {offsets = [1, 0], sizes = [3, 1], strides = [1, 1]} : vector<4x1xf32> to vector<3x1xf32>
    %144 = tpu.concatenate %143, %140 in 0 : vector<3x1xf32>, vector<1x1xf32> -> vector<4x1xf32>
    %c0_93 = arith.constant 0 : index
    %145 = memref.load %arg8[%c0_93] : memref<3xf32, #tpu.memory_space<smem>>
    %146 = vector.broadcast %145 : f32 to vector<4x1xf32>
    %147 = arith.mulf %146, %142 : vector<4x1xf32>
    %c1_94 = arith.constant 1 : index
    %148 = memref.load %arg8[%c1_94] : memref<3xf32, #tpu.memory_space<smem>>
    %149 = vector.broadcast %148 : f32 to vector<4x1xf32>
    %150 = arith.mulf %149, %139 : vector<4x1xf32>
    %151 = arith.addf %147, %150 : vector<4x1xf32>
    %c2_95 = arith.constant 2 : index
    %152 = memref.load %arg8[%c2_95] : memref<3xf32, #tpu.memory_space<smem>>
    %153 = vector.broadcast %152 : f32 to vector<4x1xf32>
    %154 = arith.mulf %153, %144 : vector<4x1xf32>
    %155 = arith.addf %151, %154 : vector<4x1xf32>
    %156 = arith.negf %155 : vector<4x1xf32>
    %157 = math.exp %156 : vector<4x1xf32>
    %cst_96 = arith.constant 1.000000e+00 : f32
    %158 = vector.broadcast %cst_96 : f32 to vector<4x1xf32>
    %159 = arith.addf %158, %157 : vector<4x1xf32>
    %160 = arith.divf %158, %159 : vector<4x1xf32>
    %c0_97 = arith.constant 0 : index
    %c0_98 = arith.constant 0 : index
    %c0_99 = arith.constant 0 : index
    %161 = vector.load %arg1[%c0_97, %c0_98, %c0_99] : memref<1x4x256xf32, #tpu.memory_space<vmem>>, vector<1x4x256xf32>
    %162 = vector.shape_cast %161 : vector<1x4x256xf32> to vector<4x256xf32>
    %163 = vector.broadcast %160 : vector<4x1xf32> to vector<4x256xf32>
    %164 = arith.mulf %135, %163 : vector<4x256xf32>
    %165 = arith.addf %164, %162 : vector<4x256xf32>
    %cst_100 = arith.constant 0.000000e+00 : f32
    %166 = vector.broadcast %cst_100 : f32 to vector<4x256xf32>
    %167 = arith.maximumf %165, %166 : vector<4x256xf32>
    %c0_101 = arith.constant 0 : index
    %c0_102 = arith.constant 0 : index
    %c0_103 = arith.constant 0 : index
    %168 = vector.load %arg10[%c0_101, %c0_102, %c0_103] : memref<1x4x256xf32, #tpu.memory_space<vmem>>, vector<1x4x256xf32>
    %169 = vector.shape_cast %168 : vector<1x4x256xf32> to vector<4x256xf32>
    %170 = vector.shape_cast %167 : vector<4x256xf32> to vector<1x4x256xf32>
    tpu.vector_store %arg10[%c0_101, %c0_102, %c0_103], %170 {strides = array<i32>} : memref<1x4x256xf32, #tpu.memory_space<vmem>>, vector<1x4x256xf32>,
    return
  }
  func.func @transform_0(%arg0: i32) -> (i32, i32, i32) {
    %c0_i32 = arith.constant 0 : i32
    %c0_i32_0 = arith.constant 0 : i32
    %c0_i32_1 = arith.constant 0 : i32
    return %arg0, %c0_i32, %c0_i32_0 : i32, i32, i32
  }
  func.func @transform_1(%arg0: i32) -> (i32, i32) {
    %c0_i32 = arith.constant 0 : i32
    %c0_i32_0 = arith.constant 0 : i32
    %c0_i32_1 = arith.constant 0 : i32
    return %c0_i32, %c0_i32_0 : i32, i32
  }
  func.func @transform_2(%arg0: i32) -> (i32, i32) {
    %c0_i32 = arith.constant 0 : i32
    %c0_i32_0 = arith.constant 0 : i32
    %c0_i32_1 = arith.constant 0 : i32
    return %c0_i32, %c0_i32_0 : i32, i32
  }
  func.func @transform_3(%arg0: i32) -> (i32, i32) {
    %c0_i32 = arith.constant 0 : i32
    %c0_i32_0 = arith.constant 0 : i32
    %c0_i32_1 = arith.constant 0 : i32
    return %c0_i32, %c0_i32_0 : i32, i32
  }
  func.func @transform_4(%arg0: i32) -> (i32, i32) {
    %c0_i32 = arith.constant 0 : i32
    %c0_i32_0 = arith.constant 0 : i32
    %c0_i32_1 = arith.constant 0 : i32
    return %c0_i32, %c0_i32_0 : i32, i32
  }
  func.func @transform_5(%arg0: i32) -> (i32, i32) {
    %c0_i32 = arith.constant 0 : i32
    %c0_i32_0 = arith.constant 0 : i32
    %c0_i32_1 = arith.constant 0 : i32
    return %c0_i32, %c0_i32_0 : i32, i32
  }
  func.func @transform_6(%arg0: i32) -> (i32, i32) {
    %c0_i32 = arith.constant 0 : i32
    %c0_i32_0 = arith.constant 0 : i32
    %c0_i32_1 = arith.constant 0 : i32
    return %c0_i32, %c0_i32_0 : i32, i32
  }
  func.func @transform_7(%arg0: i32) -> i32 {
    %c0_i32 = arith.constant 0 : i32
    %c0_i32_0 = arith.constant 0 : i32
    return %c0_i32 : i32
  }
  func.func @transform_8(%arg0: i32) -> (i32, i32) {
    %c0_i32 = arith.constant 0 : i32
    %c0_i32_0 = arith.constant 0 : i32
    %c0_i32_1 = arith.constant 0 : i32
    return %c0_i32, %c0_i32_0 : i32, i32
  }
  func.func @transform_9(%arg0: i32) -> (i32, i32, i32) {
    %c0_i32 = arith.constant 0 : i32
    %c0_i32_0 = arith.constant 0 : i32
    %c0_i32_1 = arith.constant 0 : i32
    return %arg0, %c0_i32, %c0_i32_0 : i32, i32, i32
  }
}

</mosaic_0001>

<llo_original>
// kernel: tpu_custom_call.1
$region0: #{tpu_custom_call.1}
  #allocation0 [shape = 'u32[]', space=smem, size = 0x4, offset = 0x4, fixed_abs, tag = 'smem constant byte address 0x4 - core index']
  #allocation1 [shape = 'u32[144,128]{1,0:T(1,128)}', space=vmem, size = 0x12000, scoped, tag = 'internal scratch']
  #allocation2 [shape = 'f32[36,256]{1,0:T(8,128)}', space=vmem, size = 0xa000, scoped, tag = 'scratch operand']
  %s0 = inlined_call_operand.vmem [shape: f32[2,4,256], index: 0, kind: input, shape index: {}]
  %s1 = inlined_call_operand.hbm [shape: f32[4,36], index: 1, kind: input, shape index: {}]
  %s2 = inlined_call_operand.vmem [shape: f32[4,1], index: 2, kind: input, shape index: {}]
  %s3 = inlined_call_operand.vmem [shape: f32[4,1], index: 3, kind: input, shape index: {}]
  %s4 = inlined_call_operand.hbm [shape: f32[4,36], index: 4, kind: input, shape index: {}]
  %s5 = inlined_call_operand.vmem [shape: f32[4,1], index: 5, kind: input, shape index: {}]
  %s6 = inlined_call_operand.vmem [shape: f32[4,1], index: 6, kind: input, shape index: {}]
  %s7 = inlined_call_operand.vmem [shape: f32[3], index: 7, kind: input, shape index: {}]
  %s8 = inlined_call_operand.vmem [shape: f32[9,256], index: 8, kind: input, shape index: {}]
  %s9 = inlined_call_operand.hbm [shape: f32[2,4,256], index: 9, kind: output, shape index: {}]
  %s10 = sld [smem:[#allocation0]]
  $region81: #{tpu_custom_call.1} parent=0
    _
  %s12 = ssub.s32 1, %s10
  %s13 = scalar_select 0, %s12, %s10
  $region1: #{tpu_custom_call.1} parent=0
    #allocation3 [shape = 'u8[2048]{0}', space=vmem, size = 0x800, scoped, tag = 'input window, operand 1, single buffered']
    #allocation4 [shape = 's32[2]{0}', space=sflag, size = 0x8, scoped, tag = 'scoped memory for tpu_custom_call.1']
    #allocation5 [shape = 's32[2]{0}', space=sflag, size = 0x8, scoped, tag = 'scoped memory for tpu_custom_call.1']
    #allocation6 [shape = 's32[2]{0}', space=sflag, size = 0x8, scoped, tag = 'scoped memory for tpu_custom_call.1']
    #allocation7 [shape = 'u8[2048]{0}', space=vmem, size = 0x800, scoped, tag = 'input window, operand 4, single buffered']
    #allocation8 [shape = 's32[1]{0}', space=sflag, size = 0x4, scoped, tag = 'scoped memory for tpu_custom_call.1']
    #allocation9 [shape = 'u8[512]{0}', space=smem, size = 0x200, scoped, tag = 'input window, operand 7, single buffered']
    #allocation10 [shape = 'u8[8192]{0}', space=vmem, size = 0x2000, scoped, tag = 'output window, operand 0']
    %14 = vsyncpa [#allocation4], 0
    %15 = vsyncpa [#allocation8], 0
    %16 = vsyncpa [#allocation6], 0
    %17 = vsyncpa [#allocation5], 0
    %s18 = scalar_lea.sflag [#allocation5], 1
    %19 = vsyncpa %s18, 0
    loop: start=0, step=1, limit=4
    $region2: #{tpu_custom_call.1} parent=1 // loop_pre_header
      _
    $region3: #{tpu_custom_call.1} parent=1 // loop_header
      %s21 = sphi 0, %s25
      %p22 = scmp.ge.s32.totalorder %s21, 4
      %s31 = sphi 0, %s33
      %s34 = sphi 0, %s31
      %s35 = sphi 0, %s34
      %s51 = sphi 0, %s35
      %s55 = sphi 0, %s55
      %s57 = sphi 0, %s55
      %s58 = sphi 0, %s57
      %s72 = sphi 0, %s58
      %s76 = sphi 0, %s76
      %s78 = sphi 0, %s76
      %s79 = sphi 0, %s78
      %s93 = sphi 0, %s79
      %s97 = sphi 0, %s97
      %s99 = sphi 0, %s97
      %s100 = sphi 0, %s99
      %s114 = sphi 0, %s100
      %s118 = sphi 0, %s118
      %s120 = sphi 0, %s118
      %s121 = sphi 0, %s120
      %s135 = sphi 0, %s121
      %s139 = sphi 0, %s139
      %s141 = sphi 0, %s139
      %s142 = sphi 0, %s141
      %s156 = sphi 0, %s142
      %s160 = sphi 0, %s160
      %s162 = sphi 0, %s160
      %s163 = sphi 0, %s162
      %s177 = sphi 0, %s163
      %s181 = sphi 0, %s181
      %s183 = sphi 0, %s181
      %s184 = sphi 0, %s183
      %s198 = sphi 0, %s184
      %s202 = sphi 0, %s202
      %s204 = sphi 0, %s202
      %s205 = sphi 0, %s204
      %s219 = sphi 0, %s205
      %s225 = sphi 0, %s227
      %s228 = sphi 0, %s225
      %s229 = sphi 0, %s228
      %s245 = sphi 0, %s229
    $region4: #{tpu_custom_call.1} parent=1 // loop_header_branch
      %24 = sbr.rel (%p22) target = $region8
    $region5: #{tpu_custom_call.1} parent=1 // loop_body
      %s26 = ssub.s32 %s21, 1
      %s27 = ssub.s32 %s21, 2
      %s28 = sadd.s32 %s21, 1
      %s29 = ssub.s32 %s21, %s28
      %p30 = scmp.eq.s32.totalorder %s29, 0
      %s32 = sadd.s32 %s31, 1
      %s33 = scalar_select %p30, %s31, %s32
      %p36 = pneg %p30
      %p37 = scmp.eq.s32.totalorder %s21, 1
      %p38 = por %p36, %p37
      %p39 = scmp.ne.s32.totalorder %s31, %s34
      %p40 = scmp.eq.s32.totalorder %s21, 0
      %p41 = por %p39, %p40
      %p42 = scmp.ne.s32.totalorder %s31, %s34
      %p43 = scmp.eq.s32.totalorder %s26, 1
      %p44 = por %p42, %p43
      %p45 = scmp.ne.s32.totalorder %s34, %s35
      %p46 = scmp.eq.s32.totalorder %s26, 0
      %p47 = por %p45, %p46
      %p48 = scmp.ne.s32.totalorder %s34, %s35
      %p49 = scmp.eq.s32.totalorder %s27, 1
      %p50 = por %p48, %p49
      %p52 = scmp.ne.s32.totalorder %s35, %s51
      %p53 = scmp.eq.s32.totalorder %s27, 0
      %p54 = por %p52, %p53
      %s56 = sadd.s32 %s55, 1
      %p59 = scmp.eq.s32.totalorder %s21, 1
      %p60 = scmp.ne.s32.totalorder %s55, %s57
      %p61 = scmp.eq.s32.totalorder %s21, 0
      %p62 = por %p60, %p61
      %p63 = scmp.ne.s32.totalorder %s55, %s57
      %p64 = scmp.eq.s32.totalorder %s26, 1
      %p65 = por %p63, %p64
      %p66 = scmp.ne.s32.totalorder %s57, %s58
      %p67 = scmp.eq.s32.totalorder %s26, 0
      %p68 = por %p66, %p67
      %p69 = scmp.ne.s32.totalorder %s57, %s58
      %p70 = scmp.eq.s32.totalorder %s27, 1
      %p71 = por %p69, %p70
      %p73 = scmp.ne.s32.totalorder %s58, %s72
      %p74 = scmp.eq.s32.totalorder %s27, 0
      %p75 = por %p73, %p74
      %s77 = sadd.s32 %s76, 1
      %p80 = scmp.eq.s32.totalorder %s21, 1
      %p81 = scmp.ne.s32.totalorder %s76, %s78
      %p82 = scmp.eq.s32.totalorder %s21, 0
      %p83 = por %p81, %p82
      %p84 = scmp.ne.s32.totalorder %s76, %s78
      %p85 = scmp.eq.s32.totalorder %s26, 1
      %p86 = por %p84, %p85
      %p87 = scmp.ne.s32.totalorder %s78, %s79
      %p88 = scmp.eq.s32.totalorder %s26, 0
      %p89 = por %p87, %p88
      %p90 = scmp.ne.s32.totalorder %s78, %s79
      %p91 = scmp.eq.s32.totalorder %s27, 1
      %p92 = por %p90, %p91
      %p94 = scmp.ne.s32.totalorder %s79, %s93
      %p95 = scmp.eq.s32.totalorder %s27, 0
      %p96 = por %p94, %p95
      %s98 = sadd.s32 %s97, 1
      %p101 = scmp.eq.s32.totalorder %s21, 1
      %p102 = scmp.ne.s32.totalorder %s97, %s99
      %p103 = scmp.eq.s32.totalorder %s21, 0
      %p104 = por %p102, %p103
      %p105 = scmp.ne.s32.totalorder %s97, %s99
      %p106 = scmp.eq.s32.totalorder %s26, 1
      %p107 = por %p105, %p106
      %p108 = scmp.ne.s32.totalorder %s99, %s100
      %p109 = scmp.eq.s32.totalorder %s26, 0
      %p110 = por %p108, %p109
      %p111 = scmp.ne.s32.totalorder %s99, %s100
      %p112 = scmp.eq.s32.totalorder %s27, 1
      %p113 = por %p111, %p112
      %p115 = scmp.ne.s32.totalorder %s100, %s114
      %p116 = scmp.eq.s32.totalorder %s27, 0
      %p117 = por %p115, %p116
      %s119 = sadd.s32 %s118, 1
      %p122 = scmp.eq.s32.totalorder %s21, 1
      %p123 = scmp.ne.s32.totalorder %s118, %s120
      %p124 = scmp.eq.s32.totalorder %s21, 0
      %p125 = por %p123, %p124
      %p126 = scmp.ne.s32.totalorder %s118, %s120
      %p127 = scmp.eq.s32.totalorder %s26, 1
      %p128 = por %p126, %p127
      %p129 = scmp.ne.s32.totalorder %s120, %s121
      %p130 = scmp.eq.s32.totalorder %s26, 0
      %p131 = por %p129, %p130
      %p132 = scmp.ne.s32.totalorder %s120, %s121
      %p133 = scmp.eq.s32.totalorder %s27, 1
      %p134 = por %p132, %p133
      %p136 = scmp.ne.s32.totalorder %s121, %s135
      %p137 = scmp.eq.s32.totalorder %s27, 0
      %p138 = por %p136, %p137
      %s140 = sadd.s32 %s139, 1
      %p143 = scmp.eq.s32.totalorder %s21, 1
      %p144 = scmp.ne.s32.totalorder %s139, %s141
      %p145 = scmp.eq.s32.totalorder %s21, 0
      %p146 = por %p144, %p145
      %p147 = scmp.ne.s32.totalorder %s139, %s141
      %p148 = scmp.eq.s32.totalorder %s26, 1
      %p149 = por %p147, %p148
      %p150 = scmp.ne.s32.totalorder %s141, %s142
      %p151 = scmp.eq.s32.totalorder %s26, 0
      %p152 = por %p150, %p151
      %p153 = scmp.ne.s32.totalorder %s141, %s142
      %p154 = scmp.eq.s32.totalorder %s27, 1
      %p155 = por %p153, %p154
      %p157 = scmp.ne.s32.totalorder %s142, %s156
      %p158 = scmp.eq.s32.totalorder %s27, 0
      %p159 = por %p157, %p158
      %s161 = sadd.s32 %s160, 1
      %p164 = scmp.eq.s32.totalorder %s21, 1
      %p165 = scmp.ne.s32.totalorder %s160, %s162
      %p166 = scmp.eq.s32.totalorder %s21, 0
      %p167 = por %p165, %p166
      %p168 = scmp.ne.s32.totalorder %s160, %s162
      %p169 = scmp.eq.s32.totalorder %s26, 1
      %p170 = por %p168, %p169
      %p171 = scmp.ne.s32.totalorder %s162, %s163
      %p172 = scmp.eq.s32.totalorder %s26, 0
      %p173 = por %p171, %p172
      %p174 = scmp.ne.s32.totalorder %s162, %s163
      %p175 = scmp.eq.s32.totalorder %s27, 1
      %p176 = por %p174, %p175
      %p178 = scmp.ne.s32.totalorder %s163, %s177
      %p179 = scmp.eq.s32.totalorder %s27, 0
      %p180 = por %p178, %p179
      %s182 = sadd.s32 %s181, 1
      %p185 = scmp.eq.s32.totalorder %s21, 1
      %p186 = scmp.ne.s32.totalorder %s181, %s183
      %p187 = scmp.eq.s32.totalorder %s21, 0
      %p188 = por %p186, %p187
      %p189 = scmp.ne.s32.totalorder %s181, %s183
      %p190 = scmp.eq.s32.totalorder %s26, 1
      %p191 = por %p189, %p190
      %p192 = scmp.ne.s32.totalorder %s183, %s184
      %p193 = scmp.eq.s32.totalorder %s26, 0
      %p194 = por %p192, %p193
      %p195 = scmp.ne.s32.totalorder %s183, %s184
      %p196 = scmp.eq.s32.totalorder %s27, 1
      %p197 = por %p195, %p196
      %p199 = scmp.ne.s32.totalorder %s184, %s198
      %p200 = scmp.eq.s32.totalorder %s27, 0
      %p201 = por %p199, %p200
      %s203 = sadd.s32 %s202, 1
      %p206 = scmp.eq.s32.totalorder %s21, 1
      %p207 = scmp.ne.s32.totalorder %s202, %s204
      %p208 = scmp.eq.s32.totalorder %s21, 0
      %p209 = por %p207, %p208
      %p210 = scmp.ne.s32.totalorder %s202, %s204
      %p211 = scmp.eq.s32.totalorder %s26, 1
      %p212 = por %p210, %p211
      %p213 = scmp.ne.s32.totalorder %s204, %s205
      %p214 = scmp.eq.s32.totalorder %s26, 0
      %p215 = por %p213, %p214
      %p216 = scmp.ne.s32.totalorder %s204, %s205
      %p217 = scmp.eq.s32.totalorder %s27, 1
      %p218 = por %p216, %p217
      %p220 = scmp.ne.s32.totalorder %s205, %s219
      %p221 = scmp.eq.s32.totalorder %s27, 0
      %p222 = por %p220, %p221
      %s223 = ssub.s32 %s21, %s28
      %p224 = scmp.eq.s32.totalorder %s223, 0
      %s226 = sadd.s32 %s225, 1
      %s227 = scalar_select %p224, %s225, %s226
      %p230 = pneg %p224
      %p231 = scmp.eq.s32.totalorder %s21, 1
      %p232 = por %p230, %p231
      %p233 = scmp.ne.s32.totalorder %s225, %s228
      %p234 = scmp.eq.s32.totalorder %s21, 0
      %p235 = por %p233, %p234
      %p236 = scmp.ne.s32.totalorder %s225, %s228
      %p237 = scmp.eq.s32.totalorder %s26, 1
      %p238 = por %p236, %p237
      %p239 = scmp.ne.s32.totalorder %s228, %s229
      %p240 = scmp.eq.s32.totalorder %s26, 0
      %p241 = por %p239, %p240
      %p242 = scmp.ne.s32.totalorder %s228, %s229
      %p243 = scmp.eq.s32.totalorder %s27, 1
      %p244 = por %p242, %p243
      %p246 = scmp.ne.s32.totalorder %s229, %s245
      %p247 = scmp.eq.s32.totalorder %s27, 0
      %p248 = por %p246, %p247
      %p249 = scmp.le.s32.totalorder 1, %s21
      %p250 = scmp.lt.s32.totalorder %s21, 3
      %p251 = pnand %p249, %p250
      %p252 = pneg %p251
      // Predicated region
      $region9: #{tpu_custom_call.1} parent=5 // pred_check
        _
      $region10: #{tpu_custom_call.1} parent=5 // pred_check_branch
        %254 = sbr.rel (%p251) target = $region12
      $region11: #{tpu_custom_call.1} parent=5 // pred_region
        %s255 = ssub.s32 %s21, 1
        // Predicated region
        $region13: #{tpu_custom_call.1} parent=11 // pred_check
          %p256 = pneg %p68
        $region14: #{tpu_custom_call.1} parent=11 // pred_check_branch
          %258 = sbr.rel (%p256) target = $region16
        $region15: #{tpu_custom_call.1} parent=11 // pred_region
          %s260 = ssub.s32 64, 64
          %261 = vsyncadd [#allocation4], %s260
          %s263 = sshll.u32 [#allocation3], 4
          %s264 = int_to_ptr.vmem [resolvable:$true] %s263
          %266 = dma.hbm_to_vmem [thread:$0]  %s1, 64, %s264, [#allocation4]
        $region16: #{tpu_custom_call.1} parent=11 // pred_fallthru
          _
        // Predicated region
        $region17: #{tpu_custom_call.1} parent=11 // pred_check
          %p267 = pneg %p89
        $region18: #{tpu_custom_call.1} parent=11 // pred_check_branch
          %269 = sbr.rel (%p267) target = $region20
        $region19: #{tpu_custom_call.1} parent=11 // pred_region
          _
        $region20: #{tpu_custom_call.1} parent=11 // pred_fallthru
          _
        // Predicated region
        $region21: #{tpu_custom_call.1} parent=11 // pred_check
          %p270 = pneg %p110
        $region22: #{tpu_custom_call.1} parent=11 // pred_check_branch
          %272 = sbr.rel (%p270) target = $region24
        $region23: #{tpu_custom_call.1} parent=11 // pred_region
          _
        $region24: #{tpu_custom_call.1} parent=11 // pred_fallthru
          _
        // Predicated region
        $region25: #{tpu_custom_call.1} parent=11 // pred_check
          %p273 = pneg %p131
        $region26: #{tpu_custom_call.1} parent=11 // pred_check_branch
          %275 = sbr.rel (%p273) target = $region28
        $region27: #{tpu_custom_call.1} parent=11 // pred_region
          %s277 = ssub.s32 64, 64
          %278 = vsyncadd [#allocation8], %s277
          %s280 = sshll.u32 [#allocation7], 4
          %s281 = int_to_ptr.vmem [resolvable:$true] %s280
          %283 = dma.hbm_to_vmem [thread:$0]  %s4, 64, %s281, [#allocation8]
        $region28: #{tpu_custom_call.1} parent=11 // pred_fallthru
          _
        // Predicated region
        $region29: #{tpu_custom_call.1} parent=11 // pred_check
          %p284 = pneg %p152
        $region30: #{tpu_custom_call.1} parent=11 // pred_check_branch
          %286 = sbr.rel (%p284) target = $region32
        $region31: #{tpu_custom_call.1} parent=11 // pred_region
          _
        $region32: #{tpu_custom_call.1} parent=11 // pred_fallthru
          _
        // Predicated region
        $region33: #{tpu_custom_call.1} parent=11 // pred_check
          %p287 = pneg %p173
        $region34: #{tpu_custom_call.1} parent=11 // pred_check_branch
          %289 = sbr.rel (%p287) target = $region36
        $region35: #{tpu_custom_call.1} parent=11 // pred_region
          _
        $region36: #{tpu_custom_call.1} parent=11 // pred_fallthru
          _
        // Predicated region
        $region37: #{tpu_custom_call.1} parent=11 // pred_check
          %p290 = pneg %p194
        $region38: #{tpu_custom_call.1} parent=11 // pred_check_branch
          %292 = sbr.rel (%p290) target = $region40
        $region39: #{tpu_custom_call.1} parent=11 // pred_region
          %s294 = ssub.s32 16, 16
          %295 = vsyncadd [#allocation6], %s294
          %s297 = sshll.u32 %s7, 4
          %s298 = int_to_ptr.vmem [resolvable:$true] %s297
          %300 = dma.vmem_to_smem %s298, 16, [#allocation9], [#allocation6]
        $region40: #{tpu_custom_call.1} parent=11 // pred_fallthru
          _
        // Predicated region
        $region41: #{tpu_custom_call.1} parent=11 // pred_check
          %p301 = pneg %p215
        $region42: #{tpu_custom_call.1} parent=11 // pred_check_branch
          %303 = sbr.rel (%p301) target = $region44
        $region43: #{tpu_custom_call.1} parent=11 // pred_region
          _
        $region44: #{tpu_custom_call.1} parent=11 // pred_fallthru
          _
      $region12: #{tpu_custom_call.1} parent=5 // pred_fallthru
        _
      %p304 = scmp.lt.s32.totalorder %s21, 2
      // Predicated region
      $region45: #{tpu_custom_call.1} parent=5 // pred_check
        %p305 = pneg %p304
      $region46: #{tpu_custom_call.1} parent=5 // pred_check_branch
        %307 = sbr.rel (%p305) target = $region48
      $region47: #{tpu_custom_call.1} parent=5 // pred_region
        // Predicated region
        $region49: #{tpu_custom_call.1} parent=47 // pred_check
          %p308 = pneg %p41
        $region50: #{tpu_custom_call.1} parent=47 // pred_check_branch
          %310 = sbr.rel (%p308) target = $region52
        $region51: #{tpu_custom_call.1} parent=47 // pred_region
          %p311 = scmp.lt.s32.totalorder %s21, 1
          %s312 = scalar_select %p311, %s21, 1
          %s313 = smul.addr %s312, 2
          %s314 = smul.addr %s313, 4
          %s315 = scalar_lea.vmem %s0, %s314
        $region52: #{tpu_custom_call.1} parent=47 // pred_fallthru
          _
      $region48: #{tpu_custom_call.1} parent=5 // pred_fallthru
        _
      %p316 = scmp.le.s32.totalorder 1, %s21
      %p317 = scmp.lt.s32.totalorder %s21, 3
      %p318 = pnand %p316, %p317
      %p319 = pneg %p318
      // Predicated region
      $region53: #{tpu_custom_call.1} parent=5 // pred_check
        _
      $region54: #{tpu_custom_call.1} parent=5 // pred_check_branch
        %321 = sbr.rel (%p318) target = $region56
      $region55: #{tpu_custom_call.1} parent=5 // pred_region
        %s322 = ssub.s32 %s21, 1
        // Predicated region
        $region57: #{tpu_custom_call.1} parent=55 // pred_check
          %p323 = pneg %p68
        $region58: #{tpu_custom_call.1} parent=55 // pred_check_branch
          %325 = sbr.rel (%p323) target = $region60
        $region59: #{tpu_custom_call.1} parent=55 // pred_region
          %326 = dma.done [#allocation4], 64
        $region60: #{tpu_custom_call.1} parent=55 // pred_fallthru
          _
        // Predicated region
        $region61: #{tpu_custom_call.1} parent=55 // pred_check
          %p327 = pneg %p131
        $region62: #{tpu_custom_call.1} parent=55 // pred_check_branch
          %329 = sbr.rel (%p327) target = $region64
        $region63: #{tpu_custom_call.1} parent=55 // pred_region
          %330 = dma.done [#allocation8], 64
        $region64: #{tpu_custom_call.1} parent=55 // pred_fallthru
          _
        // Predicated region
        $region65: #{tpu_custom_call.1} parent=55 // pred_check
          %p331 = pneg %p194
        $region66: #{tpu_custom_call.1} parent=55 // pred_check_branch
          %333 = sbr.rel (%p331) target = $region68
        $region67: #{tpu_custom_call.1} parent=55 // pred_region
          %334 = dma.done [#allocation6], 16
        $region68: #{tpu_custom_call.1} parent=55 // pred_fallthru
          _
        %335 = sfence
        %p336 = scmp.lt.s32.totalorder %s26, 1
        %s337 = scalar_select %p336, %s26, 1
        %s338 = smul.addr %s337, 2
        %s339 = smul.addr %s338, 4
        %s340 = scalar_lea.vmem %s0, %s339
        %p341 = pneg %p47
        %p342 = pneg %p44
        %p343 = pneg %p68
        %p344 = pneg %p65
        %p345 = pneg %p89
        %p346 = pneg %p86
        %p347 = pneg %p110
        %p348 = pneg %p107
        %p349 = pneg %p131
        %p350 = pneg %p128
        %p351 = pneg %p152
        %p352 = pneg %p149
        %p353 = pneg %p173
        %p354 = pneg %p170
        %p355 = pneg %p194
        %p356 = pneg %p191
        %p357 = pneg %p215
        %p358 = pneg %p212
        %p359 = pneg %p241
        %p360 = pneg %p238
        %s361 = sand.u32 %s228, 1
        %s362 = scalar_lea.sflag [#allocation5], %s361
        %s363 = sand.u32 %s228, 1
        %s364 = smul.addr %s363, 8
        %s365 = scalar_lea.vmem [#allocation10], %s364
        %p366 = scmp.lt.s32.totalorder %s26, 1
        %s367 = scalar_select %p366, %s26, 1
        %s368 = smul.addr %s367, 2
        %s369 = smul.addr %s368, 4
        %s370 = scalar_lea.vmem %s0, %s369
        %v371 = vld [vmem:[%s370] sm:$0xff]
        %v372 = vld [vmem:[%s8] ss:$8 sm:$0x3]
        %v374 = vcombine.high %v371, %v371
        %375 = vrot.lane.b32.xlu0 %v371, 17
        %v376 = vpop.permute.xlu0 %375
        %377 = vrot.lane.b32.xlu0 %v374, 17
        %v378 = vpop.permute.xlu0 %377
        %vm379 = vcmask 138240
        %v380 = vsel %vm379, %v376, %v378
        %v383 = vsel %vm379, 0.0, %v376
        %v385 = vlaneseq
        %v386 = vshrl.u32 %v385, 7
        %v387 = vsub.s32 0, %v386
        %v388 = vrot.slane %v372, %v387
        %v389 = vlaneseq
        %v390 = vshrl.u32 %v389, 7
        %v391 = vsub.s32 1, %v390
        %v392 = vrot.slane %v372, %v391
        %v395 = vmul.f32 %v383, %v388
        %v396 = vmul.f32 %v380, %v392
        %397 = vst [vmem:[#allocation2] sm:$0xf] %v395
        %398 = vst [vmem:[#allocation2 + $0x8] sm:$0xf] %v396
        %s399 = scalar_lea.vmem %s8, 1
        %v400 = vld [vmem:[%s399] ss:$8 sm:$0x3]
        %401 = vrot.lane.b32.xlu0 %v371, 16
        %v402 = vpop.permute.xlu0 %401
        %403 = vrot.lane.b32.xlu0 %v374, 16
        %v404 = vpop.permute.xlu0 %403
        %vm405 = vcmask 130048
        %v406 = vsel %vm405, %v402, %v404
        %v409 = vsel %vm405, 0.0, %v402
        %v411 = vlaneseq
        %v412 = vshrl.u32 %v411, 7
        %v413 = vsub.s32 0, %v412
        %v414 = vrot.slane %v400, %v413
        %v415 = vlaneseq
        %v416 = vshrl.u32 %v415, 7
        %v417 = vsub.s32 1, %v416
        %v418 = vrot.slane %v400, %v417
        %v421 = vmul.f32 %v409, %v414
        %v422 = vmul.f32 %v406, %v418
        %v425 = vrot.slane %v421, 4
        %v426 = vrot.slane %v422, 4
        %429 = vst [vmem:[#allocation2] sm:$0xf0] %v425
        %430 = vst [vmem:[#allocation2 + $0x8] sm:$0xf0] %v426
        %s431 = scalar_lea.vmem %s8, 2
        %v432 = vld [vmem:[%s431] ss:$8 sm:$0x3]
        %433 = vrot.lane.b32.xlu0 %v371, 15
        %v434 = vpop.permute.xlu0 %433
        %435 = vrot.lane.b32.xlu0 %v374, 15
        %v436 = vpop.permute.xlu0 %435
        %vm437 = vcmask 121856
        %v438 = vsel %vm437, %v434, %v436
        %v441 = vsel %vm437, 0.0, %v434
        %v443 = vlaneseq
        %v444 = vshrl.u32 %v443, 7
        %v445 = vsub.s32 0, %v444
        %v446 = vrot.slane %v432, %v445
        %v447 = vlaneseq
        %v448 = vshrl.u32 %v447, 7
        %v449 = vsub.s32 1, %v448
        %v450 = vrot.slane %v432, %v449
        %v453 = vmul.f32 %v441, %v446
        %v454 = vmul.f32 %v438, %v450
        %455 = vst [vmem:[#allocation2 + $0x10] sm:$0xf] %v453
        %456 = vst [vmem:[#allocation2 + $0x18] sm:$0xf] %v454
        %s457 = scalar_lea.vmem %s8, 3
        %v458 = vld [vmem:[%s457] ss:$8 sm:$0x3]
        %459 = vrot.lane.b32.xlu0 %v371, 1
        %v460 = vpop.permute.xlu0 %459
        %461 = vrot.lane.b32.xlu0 %v374, 1
        %v462 = vpop.permute.xlu0 %461
        %vm463 = vcmask 7168
        %v464 = vsel %vm463, %v460, %v462
        %v467 = vsel %vm463, 0.0, %v460
        %v469 = vlaneseq
        %v470 = vshrl.u32 %v469, 7
        %v471 = vsub.s32 0, %v470
        %v472 = vrot.slane %v458, %v471
        %v473 = vlaneseq
        %v474 = vshrl.u32 %v473, 7
        %v475 = vsub.s32 1, %v474
        %v476 = vrot.slane %v458, %v475
        %v479 = vmul.f32 %v467, %v472
        %v480 = vmul.f32 %v464, %v476
        %v483 = vrot.slane %v479, 4
        %v484 = vrot.slane %v480, 4
        %487 = vst [vmem:[#allocation2 + $0x10] sm:$0xf0] %v483
        %488 = vst [vmem:[#allocation2 + $0x18] sm:$0xf0] %v484
        %490 = vst [vmem:[#allocation2 + $0x20] sm:$0xf] %v371
        %491 = vst [vmem:[#allocation2 + $0x28] sm:$0xf] %v374
        %s492 = scalar_lea.vmem %s8, 5
        %v493 = vld [vmem:[%s492] ss:$8 sm:$0x3]
        %494 = vrot.lane.b32.xlu0 %v371, 127
        %v495 = vpop.permute.xlu0 %494
        %496 = vrot.lane.b32.xlu0 %v374, 127
        %v497 = vpop.permute.xlu0 %496
        %vm498 = vcmask 1039360
        %v499 = vsel %vm498, %v495, %v497
        %v502 = vsel %vm498, %v497, 0.0
        %v504 = vlaneseq
        %v505 = vshrl.u32 %v504, 7
        %v506 = vsub.s32 0, %v505
        %v507 = vrot.slane %v493, %v506
        %v508 = vlaneseq
        %v509 = vshrl.u32 %v508, 7
        %v510 = vsub.s32 1, %v509
        %v511 = vrot.slane %v493, %v510
        %v514 = vmul.f32 %v499, %v507
        %v515 = vmul.f32 %v502, %v511
        %v518 = vrot.slane %v514, 4
        %v519 = vrot.slane %v515, 4
        %522 = vst [vmem:[#allocation2 + $0x20] sm:$0xf0] %v518
        %523 = vst [vmem:[#allocation2 + $0x28] sm:$0xf0] %v519
        %s524 = scalar_lea.vmem %s8, 6
        %v525 = vld [vmem:[%s524] ss:$8 sm:$0x3]
        %526 = vrot.lane.b32.xlu0 %v371, 113
        %v527 = vpop.permute.xlu0 %526
        %528 = vrot.lane.b32.xlu0 %v374, 113
        %v529 = vpop.permute.xlu0 %528
        %vm530 = vcmask 924672
        %v531 = vsel %vm530, %v527, %v529
        %v534 = vsel %vm530, %v529, 0.0
        %v536 = vlaneseq
        %v537 = vshrl.u32 %v536, 7
        %v538 = vsub.s32 0, %v537
        %v539 = vrot.slane %v525, %v538
        %v540 = vlaneseq
        %v541 = vshrl.u32 %v540, 7
        %v542 = vsub.s32 1, %v541
        %v543 = vrot.slane %v525, %v542
        %v546 = vmul.f32 %v531, %v539
        %v547 = vmul.f32 %v534, %v543
        %548 = vst [vmem:[#allocation2 + $0x30] sm:$0xf] %v546
        %549 = vst [vmem:[#allocation2 + $0x38] sm:$0xf] %v547
        %s550 = scalar_lea.vmem %s8, 7
        %v551 = vld [vmem:[%s550] ss:$8 sm:$0x3]
        %552 = vrot.lane.b32.xlu0 %v371, 112
        %v553 = vpop.permute.xlu0 %552
        %554 = vrot.lane.b32.xlu0 %v374, 112
        %v555 = vpop.permute.xlu0 %554
        %vm556 = vcmask 916480
        %v557 = vsel %vm556, %v553, %v555
        %v560 = vsel %vm556, %v555, 0.0
        %v562 = vlaneseq
        %v563 = vshrl.u32 %v562, 7
        %v564 = vsub.s32 0, %v563
        %v565 = vrot.slane %v551, %v564
        %v566 = vlaneseq
        %v567 = vshrl.u32 %v566, 7
        %v568 = vsub.s32 1, %v567
        %v569 = vrot.slane %v551, %v568
        %v572 = vmul.f32 %v557, %v565
        %v573 = vmul.f32 %v560, %v569
        %v576 = vrot.slane %v572, 4
        %v577 = vrot.slane %v573, 4
        %580 = vst [vmem:[#allocation2 + $0x30] sm:$0xf0] %v576
        %581 = vst [vmem:[#allocation2 + $0x38] sm:$0xf0] %v577
        %s582 = scalar_lea.vmem %s8, 16
        %v583 = vld [vmem:[%s582] ss:$8 sm:$0x3]
        %584 = vrot.lane.b32.xlu0 %v371, 111
        %v585 = vpop.permute.xlu0 %584
        %586 = vrot.lane.b32.xlu0 %v374, 111
        %v587 = vpop.permute.xlu0 %586
        %vm588 = vcmask 908288
        %v589 = vsel %vm588, %v585, %v587
        %v592 = vsel %vm588, %v587, 0.0
        %v594 = vlaneseq
        %v595 = vshrl.u32 %v594, 7
        %v596 = vsub.s32 0, %v595
        %v597 = vrot.slane %v583, %v596
        %v598 = vlaneseq
        %v599 = vshrl.u32 %v598, 7
        %v600 = vsub.s32 1, %v599
        %v601 = vrot.slane %v583, %v600
        %v604 = vmul.f32 %v589, %v597
        %v605 = vmul.f32 %v592, %v601
        %606 = vst [vmem:[#allocation2 + $0x40] sm:$0xf] %v604
        %607 = vst [vmem:[#allocation2 + $0x48] sm:$0xf] %v605
        %v608 = vld [vmem:[#allocation3] sm:$0xf]
        %v609 = vld [vmem:[#allocation2] sm:$0xff]
        %v610 = vld [vmem:[#allocation2 + $0x8] sm:$0xff]
        %v611 = vld [vmem:[#allocation2 + $0x10] sm:$0xff]
        %v612 = vld [vmem:[#allocation2 + $0x18] sm:$0xff]
        %v613 = vld [vmem:[#allocation2 + $0x20] sm:$0xff]
        %v614 = vld [vmem:[#allocation2 + $0x28] sm:$0xff]
        %v615 = vld [vmem:[#allocation2 + $0x30] sm:$0xff]
        %v616 = vld [vmem:[#allocation2 + $0x38] sm:$0xff]
        %v617 = vld [vmem:[#allocation2 + $0x40] sm:$0xf]
        %v618 = vld [vmem:[#allocation2 + $0x48] sm:$0xf]
        %vm619 = vcmask 293888
        %v621 = vsel %vm619, %v608, 0
        %vm623 = vcmask 1043456
        %v625 = vsel %vm623, %v617, 0
        %v628 = vsel %vm623, %v618, 0
        %630 = vmatprep.subr.mxu0 %v610
        %631 = vmatpush1.msra.mxu0 %v609
        %632 = vmatprep.subr.mxu0 %v612
        %633 = vmatpush1.msra.mxu0 %v611
        %634 = vmatprep.subr.mxu0 %v614
        %635 = vmatpush1.msra.mxu0 %v613
        %636 = vmatprep.subr.mxu0 %v616
        %637 = vmatpush1.msra.mxu0 %v615
        %638 = vmatprep.subr.mxu0 %v628
        %639 = vmatpush1.msra.mxu0 %v625
        %640 = vmatprep.subr.mxu0 0.0
        %641 = vmatpush1.msra.mxu0 0.0
        %642 = vmatprep.subr.mxu0 0.0
        %643 = vmatpush1.msra.mxu0 0.0
        %644 = vmatprep.subr.mxu0 0.0
        %645 = vmatpush1.msra.mxu0 0.0
        %646 = vmatprep.subr.mxu0 0.0
        %647 = vmatpush1.msra.mxu0 0.0
        %648 = vmatprep.subr.mxu0 0.0
        %649 = vmatpush1.msra.mxu0 0.0
        %650 = vmatprep.subr.mxu0 0.0
        %651 = vmatpush1.msra.mxu0 0.0
        %652 = vmatprep.subr.mxu0 0.0
        %653 = vmatpush1.msra.mxu0 0.0
        %654 = vmatprep.subr.mxu0 0.0
        %655 = vmatpush1.msra.mxu0 0.0
        %656 = vmatprep.subr.mxu0 0.0
        %657 = vmatpush1.msra.mxu0 0.0
        %658 = vmatprep.subr.mxu0 0.0
        %659 = vmatpush1.msra.mxu0 0.0
        %660 = vmatprep.subr.mxu0 0.0
        %661 = vmatpush1.msra.mxu0 0.0
        %662 = vmatprep.subr.mxu0 0.0
        %663 = vmatpush1.msra.mxu0 0.0
        %664 = vmatprep.subr.mxu0 0.0
        %665 = vmatpush1.msra.mxu0 0.0
        %666 = vmatprep.subr.mxu0 0.0
        %667 = vmatpush1.msra.mxu0 0.0
        %668 = vmatprep.subr.mxu0 0.0
        %669 = vmatpush1.msra.mxu0 0.0
        %670 = vmatprep.subr.mxu0 0.0
        %671 = vmatpush1.msra.mxu0 0.0
        %672 = vmatprep.subr.mxu0 0.0
        %673 = vmatpush1.msra.mxu0 0.0
        %674 = vmatprep.subr.mxu0 0.0
        %675 = vmatpush1.msra.mxu0 0.0
        %676 = vmatprep.subr.mxu0 0.0
        %677 = vmatpush1.msra.mxu0 0.0
        %678 = vmatprep.subr.mxu0 0.0
        %679 = vmatpush1.msra.mxu0 0.0
        %680 = vmatprep.subr.mxu0 0.0
        %681 = vmatpush1.msra.mxu0 0.0
        %682 = vmatprep.subr.mxu0 0.0
        %683 = vmatpush1.msra.mxu0 0.0
        %684 = vmatprep.subr.mxu0 0.0
        %685 = vmatpush1.msra.mxu0 0.0
        %686 = vmatprep.subr.mxu0 0.0
        %687 = vmatpush1.msra.mxu0 0.0
        %688 = vmatprep.subr.mxu0 0.0
        %689 = vmatpush1.msra.mxu0 0.0
        %690 = vmatprep.subr.mxu0 0.0
        %691 = vmatpush1.msra.mxu0 0.0
        %692 = vmatprep.subr.mxu0 0.0
        %693 = vmatpush1.msra.mxu0 0.0
        %694 = vmatprep.mubr.f32.mxu0 0.0
        %695 = vmatmul.mubr.f32.gmra.mrb[0].mxu0 %v621
        %v696 = vpop.f32.mrb[0].mxu0
        %v697 = vadd.f32 0.0, %v696
        %v698 = vpop.f32.mrb[0].mxu0
        %v699 = vadd.f32 0.0, %v698
        %700 = vdwg.mxu0
        %v701 = vld [vmem:[%s2] sm:$0xf]
        %703 = vset.pattern.permute.xlu0 0
        %704 = vperm.xlu0 %703, %v701
        %v705 = vpop.permute.xlu0 %704
        %v707 = vmul.f32 %v697, %v705
        %v708 = vmul.f32 %v699, %v705
        %v709 = vld [vmem:[%s3] sm:$0xf]
        %711 = vset.pattern.permute.xlu0 0
        %712 = vperm.xlu0 %711, %v709
        %v713 = vpop.permute.xlu0 %712
        %v715 = vadd.f32 %v707, %v713
        %v716 = vadd.f32 %v708, %v713
        %v717 = vmax.f32 %v715, 0.0
        %v718 = vmax.f32 %v716, 0.0
        %v719 = vld [vmem:[%s8] ss:$8 sm:$0x3]
        %722 = vrot.lane.b32.xlu0 %v717, 17
        %v723 = vpop.permute.xlu0 %722
        %724 = vrot.lane.b32.xlu0 %v718, 17
        %v725 = vpop.permute.xlu0 %724
        %v726 = vsel %vm379, %v723, %v725
        %v729 = vsel %vm379, 0.0, %v723
        %v731 = vlaneseq
        %v732 = vshrl.u32 %v731, 7
        %v733 = vsub.s32 0, %v732
        %v734 = vrot.slane %v719, %v733
        %v735 = vlaneseq
        %v736 = vshrl.u32 %v735, 7
        %v737 = vsub.s32 1, %v736
        %v738 = vrot.slane %v719, %v737
        %v741 = vmul.f32 %v729, %v734
        %v742 = vmul.f32 %v726, %v738
        %743 = vst [vmem:[#allocation2] sm:$0xf] %v741
        %744 = vst [vmem:[#allocation2 + $0x8] sm:$0xf] %v742
        %v745 = vld [vmem:[%s399] ss:$8 sm:$0x3]
        %746 = vrot.lane.b32.xlu0 %v717, 16
        %v747 = vpop.permute.xlu0 %746
        %748 = vrot.lane.b32.xlu0 %v718, 16
        %v749 = vpop.permute.xlu0 %748
        %v750 = vsel %vm405, %v747, %v749
        %v753 = vsel %vm405, 0.0, %v747
        %v755 = vlaneseq
        %v756 = vshrl.u32 %v755, 7
        %v757 = vsub.s32 0, %v756
        %v758 = vrot.slane %v745, %v757
        %v759 = vlaneseq
        %v760 = vshrl.u32 %v759, 7
        %v761 = vsub.s32 1, %v760
        %v762 = vrot.slane %v745, %v761
        %v765 = vmul.f32 %v753, %v758
        %v766 = vmul.f32 %v750, %v762
        %v769 = vrot.slane %v765, 4
        %v770 = vrot.slane %v766, 4
        %773 = vst [vmem:[#allocation2] sm:$0xf0] %v769
        %774 = vst [vmem:[#allocation2 + $0x8] sm:$0xf0] %v770
        %v775 = vld [vmem:[%s431] ss:$8 sm:$0x3]
        %776 = vrot.lane.b32.xlu0 %v717, 15
        %v777 = vpop.permute.xlu0 %776
        %778 = vrot.lane.b32.xlu0 %v718, 15
        %v779 = vpop.permute.xlu0 %778
        %v780 = vsel %vm437, %v777, %v779
        %v783 = vsel %vm437, 0.0, %v777
        %v785 = vlaneseq
        %v786 = vshrl.u32 %v785, 7
        %v787 = vsub.s32 0, %v786
        %v788 = vrot.slane %v775, %v787
        %v789 = vlaneseq
        %v790 = vshrl.u32 %v789, 7
        %v791 = vsub.s32 1, %v790
        %v792 = vrot.slane %v775, %v791
        %v795 = vmul.f32 %v783, %v788
        %v796 = vmul.f32 %v780, %v792
        %797 = vst [vmem:[#allocation2 + $0x10] sm:$0xf] %v795
        %798 = vst [vmem:[#allocation2 + $0x18] sm:$0xf] %v796
        %v799 = vld [vmem:[%s457] ss:$8 sm:$0x3]
        %800 = vrot.lane.b32.xlu0 %v717, 1
        %v801 = vpop.permute.xlu0 %800
        %802 = vrot.lane.b32.xlu0 %v718, 1
        %v803 = vpop.permute.xlu0 %802
        %v804 = vsel %vm463, %v801, %v803
        %v807 = vsel %vm463, 0.0, %v801
        %v809 = vlaneseq
        %v810 = vshrl.u32 %v809, 7
        %v811 = vsub.s32 0, %v810
        %v812 = vrot.slane %v799, %v811
        %v813 = vlaneseq
        %v814 = vshrl.u32 %v813, 7
        %v815 = vsub.s32 1, %v814
        %v816 = vrot.slane %v799, %v815
        %v819 = vmul.f32 %v807, %v812
        %v820 = vmul.f32 %v804, %v816
        %v823 = vrot.slane %v819, 4
        %v824 = vrot.slane %v820, 4
        %827 = vst [vmem:[#allocation2 + $0x10] sm:$0xf0] %v823
        %828 = vst [vmem:[#allocation2 + $0x18] sm:$0xf0] %v824
        %829 = vst [vmem:[#allocation2 + $0x20] sm:$0xf] %v717
        %830 = vst [vmem:[#allocation2 + $0x28] sm:$0xf] %v718
        %v831 = vld [vmem:[%s492] ss:$8 sm:$0x3]
        %832 = vrot.lane.b32.xlu0 %v717, 127
        %v833 = vpop.permute.xlu0 %832
        %834 = vrot.lane.b32.xlu0 %v718, 127
        %v835 = vpop.permute.xlu0 %834
        %v836 = vsel %vm498, %v833, %v835
        %v839 = vsel %vm498, %v835, 0.0
        %v841 = vlaneseq
        %v842 = vshrl.u32 %v841, 7
        %v843 = vsub.s32 0, %v842
        %v844 = vrot.slane %v831, %v843
        %v845 = vlaneseq
        %v846 = vshrl.u32 %v845, 7
        %v847 = vsub.s32 1, %v846
        %v848 = vrot.slane %v831, %v847
        %v851 = vmul.f32 %v836, %v844
        %v852 = vmul.f32 %v839, %v848
        %v855 = vrot.slane %v851, 4
        %v856 = vrot.slane %v852, 4
        %859 = vst [vmem:[#allocation2 + $0x20] sm:$0xf0] %v855
        %860 = vst [vmem:[#allocation2 + $0x28] sm:$0xf0] %v856
        %v861 = vld [vmem:[%s524] ss:$8 sm:$0x3]
        %862 = vrot.lane.b32.xlu0 %v717, 113
        %v863 = vpop.permute.xlu0 %862
        %864 = vrot.lane.b32.xlu0 %v718, 113
        %v865 = vpop.permute.xlu0 %864
        %v866 = vsel %vm530, %v863, %v865
        %v869 = vsel %vm530, %v865, 0.0
        %v871 = vlaneseq
        %v872 = vshrl.u32 %v871, 7
        %v873 = vsub.s32 0, %v872
        %v874 = vrot.slane %v861, %v873
        %v875 = vlaneseq
        %v876 = vshrl.u32 %v875, 7
        %v877 = vsub.s32 1, %v876
        %v878 = vrot.slane %v861, %v877
        %v881 = vmul.f32 %v866, %v874
        %v882 = vmul.f32 %v869, %v878
        %883 = vst [vmem:[#allocation2 + $0x30] sm:$0xf] %v881
        %884 = vst [vmem:[#allocation2 + $0x38] sm:$0xf] %v882
        %v885 = vld [vmem:[%s550] ss:$8 sm:$0x3]
        %886 = vrot.lane.b32.xlu0 %v717, 112
        %v887 = vpop.permute.xlu0 %886
        %888 = vrot.lane.b32.xlu0 %v718, 112
        %v889 = vpop.permute.xlu0 %888
        %v890 = vsel %vm556, %v887, %v889
        %v893 = vsel %vm556, %v889, 0.0
        %v895 = vlaneseq
        %v896 = vshrl.u32 %v895, 7
        %v897 = vsub.s32 0, %v896
        %v898 = vrot.slane %v885, %v897
        %v899 = vlaneseq
        %v900 = vshrl.u32 %v899, 7
        %v901 = vsub.s32 1, %v900
        %v902 = vrot.slane %v885, %v901
        %v905 = vmul.f32 %v890, %v898
        %v906 = vmul.f32 %v893, %v902
        %v909 = vrot.slane %v905, 4
        %v910 = vrot.slane %v906, 4
        %913 = vst [vmem:[#allocation2 + $0x30] sm:$0xf0] %v909
        %914 = vst [vmem:[#allocation2 + $0x38] sm:$0xf0] %v910
        %v915 = vld [vmem:[%s582] ss:$8 sm:$0x3]
        %916 = vrot.lane.b32.xlu0 %v717, 111
        %v917 = vpop.permute.xlu0 %916
        %918 = vrot.lane.b32.xlu0 %v718, 111
        %v919 = vpop.permute.xlu0 %918
        %v920 = vsel %vm588, %v917, %v919
        %v923 = vsel %vm588, %v919, 0.0
        %v925 = vlaneseq
        %v926 = vshrl.u32 %v925, 7
        %v927 = vsub.s32 0, %v926
        %v928 = vrot.slane %v915, %v927
        %v929 = vlaneseq
        %v930 = vshrl.u32 %v929, 7
        %v931 = vsub.s32 1, %v930
        %v932 = vrot.slane %v915, %v931
        %v935 = vmul.f32 %v920, %v928
        %v936 = vmul.f32 %v923, %v932
        %937 = vst [vmem:[#allocation2 + $0x40] sm:$0xf] %v935
        %938 = vst [vmem:[#allocation2 + $0x48] sm:$0xf] %v936
        %v939 = vld [vmem:[#allocation7] sm:$0xf]
        %v940 = vld [vmem:[#allocation2] sm:$0xff]
        %v941 = vld [vmem:[#allocation2 + $0x8] sm:$0xff]
        %v942 = vld [vmem:[#allocation2 + $0x10] sm:$0xff]
        %v943 = vld [vmem:[#allocation2 + $0x18] sm:$0xff]
        %v944 = vld [vmem:[#allocation2 + $0x20] sm:$0xff]
        %v945 = vld [vmem:[#allocation2 + $0x28] sm:$0xff]
        %v946 = vld [vmem:[#allocation2 + $0x30] sm:$0xff]
        %v947 = vld [vmem:[#allocation2 + $0x38] sm:$0xff]
        %v948 = vld [vmem:[#allocation2 + $0x40] sm:$0xf]
        %v949 = vld [vmem:[#allocation2 + $0x48] sm:$0xf]
        %v951 = vsel %vm619, %v939, 0
        %v954 = vsel %vm623, %v948, 0
        %v957 = vsel %vm623, %v949, 0
        %959 = vmatprep.subr.mxu0 %v941
        %960 = vmatpush1.msra.mxu0 %v940
        %961 = vmatprep.subr.mxu0 %v943
        %962 = vmatpush1.msra.mxu0 %v942
        %963 = vmatprep.subr.mxu0 %v945
        %964 = vmatpush1.msra.mxu0 %v944
        %965 = vmatprep.subr.mxu0 %v947
        %966 = vmatpush1.msra.mxu0 %v946
        %967 = vmatprep.subr.mxu0 %v957
        %968 = vmatpush1.msra.mxu0 %v954
        %969 = vmatprep.subr.mxu0 0.0
        %970 = vmatpush1.msra.mxu0 0.0
        %971 = vmatprep.subr.mxu0 0.0
        %972 = vmatpush1.msra.mxu0 0.0
        %973 = vmatprep.subr.mxu0 0.0
        %974 = vmatpush1.msra.mxu0 0.0
        %975 = vmatprep.subr.mxu0 0.0
        %976 = vmatpush1.msra.mxu0 0.0
        %977 = vmatprep.subr.mxu0 0.0
        %978 = vmatpush1.msra.mxu0 0.0
        %979 = vmatprep.subr.mxu0 0.0
        %980 = vmatpush1.msra.mxu0 0.0
        %981 = vmatprep.subr.mxu0 0.0
        %982 = vmatpush1.msra.mxu0 0.0
        %983 = vmatprep.subr.mxu0 0.0
        %984 = vmatpush1.msra.mxu0 0.0
        %985 = vmatprep.subr.mxu0 0.0
        %986 = vmatpush1.msra.mxu0 0.0
        %987 = vmatprep.subr.mxu0 0.0
        %988 = vmatpush1.msra.mxu0 0.0
        %989 = vmatprep.subr.mxu0 0.0
        %990 = vmatpush1.msra.mxu0 0.0
        %991 = vmatprep.subr.mxu0 0.0
        %992 = vmatpush1.msra.mxu0 0.0
        %993 = vmatprep.subr.mxu0 0.0
        %994 = vmatpush1.msra.mxu0 0.0
        %995 = vmatprep.subr.mxu0 0.0
        %996 = vmatpush1.msra.mxu0 0.0
        %997 = vmatprep.subr.mxu0 0.0
        %998 = vmatpush1.msra.mxu0 0.0
        %999 = vmatprep.subr.mxu0 0.0
        %1000 = vmatpush1.msra.mxu0 0.0
        %1001 = vmatprep.subr.mxu0 0.0
        %1002 = vmatpush1.msra.mxu0 0.0
        %1003 = vmatprep.subr.mxu0 0.0
        %1004 = vmatpush1.msra.mxu0 0.0
        %1005 = vmatprep.subr.mxu0 0.0
        %1006 = vmatpush1.msra.mxu0 0.0
        %1007 = vmatprep.subr.mxu0 0.0
        %1008 = vmatpush1.msra.mxu0 0.0
        %1009 = vmatprep.subr.mxu0 0.0
        %1010 = vmatpush1.msra.mxu0 0.0
        %1011 = vmatprep.subr.mxu0 0.0
        %1012 = vmatpush1.msra.mxu0 0.0
        %1013 = vmatprep.subr.mxu0 0.0
        %1014 = vmatpush1.msra.mxu0 0.0
        %1015 = vmatprep.subr.mxu0 0.0
        %1016 = vmatpush1.msra.mxu0 0.0
        %1017 = vmatprep.subr.mxu0 0.0
        %1018 = vmatpush1.msra.mxu0 0.0
        %1019 = vmatprep.subr.mxu0 0.0
        %1020 = vmatpush1.msra.mxu0 0.0
        %1021 = vmatprep.subr.mxu0 0.0
        %1022 = vmatpush1.msra.mxu0 0.0
        %1023 = vmatprep.mubr.f32.mxu0 0.0
        %1024 = vmatmul.mubr.f32.gmra.mrb[0].mxu0 %v951
        %v1025 = vpop.f32.mrb[0].mxu0
        %v1026 = vadd.f32 0.0, %v1025
        %v1027 = vpop.f32.mrb[0].mxu0
        %v1028 = vadd.f32 0.0, %v1027
        %1029 = vdwg.mxu0
        %v1030 = vld [vmem:[%s5] sm:$0xf]
        %1032 = vset.pattern.permute.xlu0 0
        %1033 = vperm.xlu0 %1032, %v1030
        %v1034 = vpop.permute.xlu0 %1033
        %v1036 = vmul.f32 %v1026, %v1034
        %v1037 = vmul.f32 %v1028, %v1034
        %v1038 = vld [vmem:[%s6] sm:$0xf]
        %1040 = vset.pattern.permute.xlu0 0
        %1041 = vperm.xlu0 %1040, %v1038
        %v1042 = vpop.permute.xlu0 %1041
        %v1044 = vadd.f32 %v1036, %v1042
        %v1045 = vadd.f32 %v1037, %v1042
        %v1046 = vsel %vm623, %v1044, 0.0
        %v1047 = vsel %vm623, %v1045, 0.0
        %v1048 = vadd.f32 %v1046, %v1047
        %1049 = vadd.xlane.f32.xlu0 %v1048
        %v1050 = vpop.xlane.xlu0 %1049
        %v1051 = vmul.f32 %v1050, 0.00390625
        %v1053 = vrot.slane %v1051, 7
        %vm1055 = vcmask 1040384
        %v1056 = vsel %vm1055, 0.0, %v1053
        %v1057 = vrot.slane %v1051, 1
        %vm1059 = vcmask 1042432
        %v1060 = vsel %vm1059, %v1057, 0.0
        %s1061 = sld [smem:[#allocation9]]
        %v1062 = vstv %s1061
        %v1063 = vmul.f32 %v1062, %v1056
        %s1064 = sld [smem:[#allocation9 + $0x1]]
        %v1065 = vstv %s1064
        %v1066 = vmul.f32 %v1065, %v1051
        %v1067 = vadd.f32 %v1063, %v1066
        %s1068 = sld [smem:[#allocation9 + $0x2]]
        %v1069 = vstv %s1068
        %v1070 = vmul.f32 %v1069, %v1060
        %v1071 = vadd.f32 %v1067, %v1070
        %v1072 = vxor.u32 %v1071, 2147483648
        %v1073 = vmul.f32 %v1072, 1.442695
        %v1074 = vpow.pop %v1073
        %v1075 = vadd.f32 %v1074, 1.0
        %v1076 = vrcp.pop %v1075
        %v1077 = vmul.f32 1.0, %v1076
        %v1078 = vld [vmem:[%s370] sm:$0xff]
        %1080 = vset.pattern.permute.xlu0 0
        %1081 = vperm.xlu0 %1080, %v1077
        %v1082 = vpop.permute.xlu0 %1081
        %v1084 = vmul.f32 %v1044, %v1082
        %v1085 = vmul.f32 %v1045, %v1082
        %v1087 = vcombine.high %v1078, %v1078
        %v1089 = vadd.f32 %v1084, %v1078
        %v1090 = vadd.f32 %v1085, %v1087
        %v1091 = vmax.f32 %v1089, 0.0
        %v1092 = vmax.f32 %v1090, 0.0
        %v1095 = vcombine.low %v1091, %v1092
        %1097 = vst [vmem:[%s365] sm:$0xff] %v1095
        %s1098 = sand.u32 %s228, 1
        %s1099 = scalar_lea.sflag [#allocation5], %s1098
        %s1100 = sand.u32 %s228, 1
        %s1101 = smul.addr %s1100, 8
        %s1102 = scalar_lea.vmem [#allocation10], %s1101
        // Predicated region
        $region69: #{tpu_custom_call.1} parent=55 // pred_check
          %p1103 = pneg %p238
        $region70: #{tpu_custom_call.1} parent=55 // pred_check_branch
          %1105 = sbr.rel (%p1103) target = $region72
        $region71: #{tpu_custom_call.1} parent=55 // pred_region
          %s1107 = ssub.s32 128, 128
          %1108 = vsyncadd %s1099, %s1107
          %s1109 = smul.addr %s26, 2
          %s1110 = smul.addr %s1109, 64
          %s1111 = scalar_lea.hbm %s9, %s1110
          %s1113 = sshll.u32 %s1102, 4
          %s1114 = int_to_ptr.vmem [resolvable:$true] %s1113
          %1116 = dma.vmem_to_hbm [thread:$0]  %s1114, 128, %s1111, %s1099
        $region72: #{tpu_custom_call.1} parent=55 // pred_fallthru
          _
      $region56: #{tpu_custom_call.1} parent=5 // pred_fallthru
        _
      %p1117 = scmp.le.s32.totalorder 2, %s21
      // Predicated region
      $region73: #{tpu_custom_call.1} parent=5 // pred_check
        %p1118 = pneg %p1117
      $region74: #{tpu_custom_call.1} parent=5 // pred_check_branch
        %1120 = sbr.rel (%p1118) target = $region76
      $region75: #{tpu_custom_call.1} parent=5 // pred_region
        %s1121 = ssub.s32 %s21, 2
        // Predicated region
        $region77: #{tpu_custom_call.1} parent=75 // pred_check
          %p1122 = pneg %p244
        $region78: #{tpu_custom_call.1} parent=75 // pred_check_branch
          %1124 = sbr.rel (%p1122) target = $region80
        $region79: #{tpu_custom_call.1} parent=75 // pred_region
          %s1125 = sand.u32 %s229, 1
          %s1126 = scalar_lea.sflag [#allocation5], %s1125
          %s1127 = sand.u32 %s229, 1
          %s1128 = smul.addr %s1127, 8
          %s1129 = scalar_lea.vmem [#allocation10], %s1128
          %1130 = dma.done %s1126, 128
        $region80: #{tpu_custom_call.1} parent=75 // pred_fallthru
          _
      $region76: #{tpu_custom_call.1} parent=5 // pred_fallthru
        _
    $region6: #{tpu_custom_call.1} parent=1 // loop_footer
      %s25 = sadd.s32 1, %s21
    $region7: #{tpu_custom_call.1} parent=1 // loop_footer_branch
      %20 = sbr.rel target = $region3
    $region8: #{tpu_custom_call.1} parent=1 // loop_exit
      _
    %1131 = vsyncpa [#allocation4], 1
    %s1132 = scalar_lea.sflag [#allocation4], 1
    %1133 = vsyncpa %s1132, 1
    %1134 = vsyncpa [#allocation8], 1
    %1135 = vsyncpa [#allocation5], 1
    %s1136 = scalar_lea.sflag [#allocation5], 1
    %1137 = vsyncpa %s1136, 1
    %1138 = vsyncpa [#allocation6], 1
    %s1139 = scalar_lea.sflag [#allocation6], 1
    %1140 = vsyncpa %s1139, 1

</llo_original>
